<compile_context>
chip_gen: v5e
topology: v5e:2x2
jax: 0.10.0
libtpu: 0.0.40
codegen_flags: <defaults>
</compile_context>

<pallas_src>
import jax
import jax.numpy as jnp
from jax.experimental import pallas as pl
from jax.experimental.pallas import tpu as pltpu

LANE = 128
SUBLANE = 8


def _vmem():
    return pl.BlockSpec(memory_space=pltpu.MemorySpace.VMEM)


def _round_up(n, m):
    return ((n + m - 1) // m) * m


# ----------------------------------------------------------------------------
# Fused kernel: synthetic trunk (1x1 conv + ReLU + global avg pool) + head + softmax
# ----------------------------------------------------------------------------
def new_resnet_kernel(x_ref, pool_ref, conv_w, conv_b,
                      w1, b1, w2, b2, w3, b3, w4, b4,
                      logit_ref, prob_ref):
    # ---- trunk: single 2-D matmul over all N*HW rows, then ReLU ----
    xb = x_ref[...].astype(jnp.bfloat16)                                 # (NHW, C)
    y = jnp.dot(xb, conv_w[...], preferred_element_type=jnp.float32)     # (NHW, F)
    y = jnp.maximum(y + conv_b[...], 0.0)
    # global average pool as an MXU matmul against a precomputed (N_pad, NHW) 1/HW matrix
    feat = jnp.dot(pool_ref[...], y.astype(jnp.bfloat16),
                   preferred_element_type=jnp.float32)                   # (N_pad, F)

    # ---- head: BN folded into the Linear weights; Dropout(0.5) = identity (eval) ----
    h = jnp.dot(feat.astype(jnp.bfloat16), w1[...],
                preferred_element_type=jnp.float32) + b1[...]
    h = jnp.maximum(h, 0.0)
    h = jnp.dot(h.astype(jnp.bfloat16), w2[...],
                preferred_element_type=jnp.float32) + b2[...]
    h = jnp.maximum(h, 0.0)
    h = jnp.dot(h.astype(jnp.bfloat16), w3[...],
                preferred_element_type=jnp.float32) + b3[...]
    h = jnp.maximum(h, 0.0)
    logit = jnp.dot(h.astype(jnp.bfloat16), w4[...],
                    preferred_element_type=jnp.float32) + b4[...]        # (N_pad, C_pad)
    logit_ref[...] = logit

    # softmax over classes (dim=1); padded class columns carry a -1e30 bias -> exp == 0
    m = jnp.max(logit, axis=1, keepdims=True)
    e = jnp.exp(logit - m)
    denom = jnp.sum(e, axis=1, keepdims=True)
    prob_ref[...] = e * pl.reciprocal(denom, approx=True)
    # TODO(synk): PrintLayer (host-side print of the logits tensor) has no kernel equivalent; omitted.


# ----------------------------------------------------------------------------
# Parameter construction (deterministic, in-script) with BatchNorm folding
# ----------------------------------------------------------------------------
def init_params(key, in_ch, num_features, num_classes):
    dims = [num_features, 512, 256, 128, num_classes]
    keys = jax.random.split(key, 32)
    ki = iter(range(32))

    # synthetic backbone 1x1 conv (C -> F)
    conv_w = 0.1 * jax.random.normal(keys[next(ki)], (in_ch, num_features), jnp.float32)
    conv_b = 0.1 * jax.random.normal(keys[next(ki)], (1, num_features), jnp.float32)

    # 4 BatchNorm layers (eval-mode running-stat affine) over F, 512, 256, 128
    bn_s, bn_t = [], []
    for c in dims[:-1]:
        gamma = 1.0 + 0.05 * jax.random.normal(keys[next(ki)], (c,), jnp.float32)
        beta = 0.05 * jax.random.normal(keys[next(ki)], (c,), jnp.float32)
        mean = 0.05 * jax.random.normal(keys[next(ki)], (c,), jnp.float32)
        var = 1.0 + 0.05 * jax.random.uniform(keys[next(ki)], (c,), jnp.float32)
        s = gamma / jnp.sqrt(var + 1e-5)
        bn_s.append(s)
        bn_t.append(beta - mean * s)

    # 4 Linear layers (stored transposed: (in, out) for right-multiply)
    ws, bs = [], []
    for i in range(4):
        fan_in, fan_out = dims[i], dims[i + 1]
        scale = 1.0 / jnp.sqrt(jnp.float32(fan_in))
        ws.append(scale * jax.random.normal(keys[next(ki)], (fan_in, fan_out), jnp.float32))
        bs.append(scale * jax.random.normal(keys[next(ki)], (1, fan_out), jnp.float32))

    # Fold BN affines into the adjacent Linears (host-side, zero runtime cost):
    #   layer 1: BN0 precedes it (row scale + input shift), BN1 follows it (col scale + shift)
    w1 = (bn_s[0][:, None] * ws[0]) * bn_s[1][None, :]
    b1 = (bn_t[0][None, :] @ ws[0] + bs[0]) * bn_s[1][None, :] + bn_t[1][None, :]
    #   layers 2, 3: BN follows (column scale + shift)
    w2 = ws[1] * bn_s[2][None, :]
    b2 = bs[1] * bn_s[2][None, :] + bn_t[2][None, :]
    w3 = ws[2] * bn_s[3][None, :]
    b3 = bs[2] * bn_s[3][None, :] + bn_t[3][None, :]

    return {
        "conv_w": conv_w, "conv_b": conv_b,
        "w1": w1, "b1": b1, "w2": w2, "b2": b2,
        "w3": w3, "b3": b3, "w4": ws[3], "b4": bs[3],
    }


# ----------------------------------------------------------------------------
# Wrapper
# ----------------------------------------------------------------------------
def new_resnet_forward(x_nchw, params, num_features, num_classes):
    N, C, H, W = x_nchw.shape
    HW = H * W
    NHW = N * HW
    n_pad = max(_round_up(N, SUBLANE), SUBLANE)          # batch padded to full sublanes
    c_pad = max(_round_up(num_classes, LANE), LANE)      # classes padded to full lanes

    # layout plumbing (glue): NCHW -> (N*HW, C), channels last on lanes
    x2d = jnp.transpose(x_nchw, (0, 2, 3, 1)).reshape(NHW, C).astype(jnp.float32)

    # pooling matrix: row i averages the HW positions of sample i; extra rows are zero
    row = jnp.arange(n_pad, dtype=jnp.int32)[:, None]
    col = jnp.arange(NHW, dtype=jnp.int32)[None, :]
    pool = jnp.where((col // HW) == row, 1.0 / HW, 0.0).astype(jnp.bfloat16)

    # lane-dense classifier: zero-pad weight columns, bias pad = -1e30 (softmax-safe)
    w4p = jnp.zeros((params["w4"].shape[0], c_pad), jnp.float32)
    w4p = w4p.at[:, :num_classes].set(params["w4"])
    b4p = jnp.full((1, c_pad), -1e30, jnp.float32)
    b4p = b4p.at[:, :num_classes].set(params["b4"])

    args = (
        x2d, pool,
        params["conv_w"].astype(jnp.bfloat16), params["conv_b"],
        params["w1"].astype(jnp.bfloat16), params["b1"],
        params["w2"].astype(jnp.bfloat16), params["b2"],
        params["w3"].astype(jnp.bfloat16), params["b3"],
        w4p.astype(jnp.bfloat16), b4p,
    )

    logit_pad, prob_pad = pl.pallas_call(
        new_resnet_kernel,
        out_shape=(
            jax.ShapeDtypeStruct((n_pad, c_pad), jnp.float32),
            jax.ShapeDtypeStruct((n_pad, c_pad), jnp.float32),
        ),
        in_specs=[_vmem()] * len(args),
        out_specs=(_vmem(), _vmem()),
        compiler_params=pltpu.CompilerParams(vmem_limit_bytes=32 * 1024 * 1024),
    )(*args)

    return logit_pad[:N, :num_classes], prob_pad[:N, :num_classes]


# ----------------------------------------------------------------------------
# Pure-JAX reference (f32, same folded parameters) for a loose numerical check
# ----------------------------------------------------------------------------
def reference_forward(x_nchw, params):
    N, C, H, W = x_nchw.shape
    x = jnp.transpose(x_nchw, (0, 2, 3, 1)).reshape(N, H * W, C).astype(jnp.float32)
    y = jnp.maximum(jnp.einsum("npc,cf->npf", x, params["conv_w"]) + params["conv_b"], 0.0)
    feat = jnp.mean(y, axis=1)
    h = jnp.maximum(feat @ params["w1"] + params["b1"], 0.0)
    h = jnp.maximum(h @ params["w2"] + params["b2"], 0.0)
    h = jnp.maximum(h @ params["w3"] + params["b3"], 0.0)
    logit = h @ params["w4"] + params["b4"]
    return logit, jax.nn.softmax(logit, axis=1)


if __name__ == "__main__":
    NUM_FEATURES = 32   # `num_features` pulled from the pretrained model's last BN
    NUM_CLASSES = 10
    N, C, H, W = 2, 4, 16, 16

    key = jax.random.PRNGKey(0)
    k_x, k_p = jax.random.split(key)
    x = jax.random.normal(k_x, (N, C, H, W), jnp.float32)
    params = init_params(k_p, C, NUM_FEATURES, NUM_CLASSES)

    logit, prob = new_resnet_forward(x, params, NUM_FEATURES, NUM_CLASSES)
    jax.block_until_ready((logit, prob))

    assert logit.shape == (N, NUM_CLASSES) and prob.shape == (N, NUM_CLASSES)
    assert bool(jnp.all(jnp.isfinite(logit))) and bool(jnp.all(jnp.isfinite(prob)))
    assert bool(jnp.allclose(jnp.sum(prob, axis=1), 1.0, atol=1e-2))

    # loose check against f32 reference (kernel uses bf16 matmul operands)
    ref_logit, ref_prob = reference_forward(x, params)
    assert bool(jnp.allclose(prob, ref_prob, atol=5e-2))
    assert bool(jnp.allclose(logit, ref_logit, atol=5e-2, rtol=5e-2))

    print("KERNEL_OK")
</pallas_src>

<mosaic_0001>
module attributes {stable_mosaic.version = 11 : i64} {
  func.func @new_resnet_kernel(%arg0: memref<512x4xf32, #tpu.memory_space<vmem>>, %arg1: memref<8x512xbf16, #tpu.memory_space<vmem>>, %arg2: memref<4x32xbf16, #tpu.memory_space<vmem>>, %arg3: memref<1x32xf32, #tpu.memory_space<vmem>>, %arg4: memref<32x512xbf16, #tpu.memory_space<vmem>>, %arg5: memref<1x512xf32, #tpu.memory_space<vmem>>, %arg6: memref<512x256xbf16, #tpu.memory_space<vmem>>, %arg7: memref<1x256xf32, #tpu.memory_space<vmem>>, %arg8: memref<256x128xbf16, #tpu.memory_space<vmem>>, %arg9: memref<1x128xf32, #tpu.memory_space<vmem>>, %arg10: memref<128x128xbf16, #tpu.memory_space<vmem>>, %arg11: memref<1x128xf32, #tpu.memory_space<vmem>>, %arg12: memref<8x128xf32, #tpu.memory_space<vmem>>, %arg13: memref<8x128xf32, #tpu.memory_space<vmem>>) attributes {dimension_semantics = [], scalar_prefetch = 0 : i64, scratch_operands = 0 : i64, tpu.core_type = #tpu.core_type<tc>} {
    %c0 = arith.constant 0 : index
    %c0_0 = arith.constant 0 : index
    %0 = vector.load %arg0[%c0, %c0_0] : memref<512x4xf32, #tpu.memory_space<vmem>>, vector<512x4xf32>
    %1 = arith.truncf %0 : vector<512x4xf32> to vector<512x4xbf16>
    %c0_1 = arith.constant 0 : index
    %c0_2 = arith.constant 0 : index
    %2 = vector.load %arg2[%c0_1, %c0_2] : memref<4x32xbf16, #tpu.memory_space<vmem>>, vector<4x32xbf16>
    %cst = arith.constant dense<0.000000e+00> : vector<512x32xf32>
    %3 = tpu.matmul %1, %2, %cst {dimension_numbers = #tpu.dot_dimension_numbers<[1], [0], [0], [1], [0, 0, 1, 1], [], []>} : vector<512x4xbf16>, vector<4x32xbf16>, vector<512x32xf32> -> vector<512x32xf32>
    %c0_3 = arith.constant 0 : index
    %c0_4 = arith.constant 0 : index
    %4 = vector.load %arg3[%c0_3, %c0_4] : memref<1x32xf32, #tpu.memory_space<vmem>>, vector<1x32xf32>
    %5 = vector.broadcast %4 : vector<1x32xf32> to vector<512x32xf32>
    %6 = arith.addf %3, %5 : vector<512x32xf32>
    %cst_5 = arith.constant 0.000000e+00 : f32
    %7 = vector.broadcast %cst_5 : f32 to vector<512x32xf32>
    %8 = arith.maximumf %6, %7 : vector<512x32xf32>
    %c0_6 = arith.constant 0 : index
    %c0_7 = arith.constant 0 : index
    %9 = vector.load %arg1[%c0_6, %c0_7] : memref<8x512xbf16, #tpu.memory_space<vmem>>, vector<8x512xbf16>
    %10 = arith.truncf %8 : vector<512x32xf32> to vector<512x32xbf16>
    %cst_8 = arith.constant dense<0.000000e+00> : vector<8x32xf32>
    %11 = tpu.matmul %9, %10, %cst_8 {dimension_numbers = #tpu.dot_dimension_numbers<[1], [0], [0], [1], [0, 0, 1, 1], [], []>} : vector<8x512xbf16>, vector<512x32xbf16>, vector<8x32xf32> -> vector<8x32xf32>
    %12 = arith.truncf %11 : vector<8x32xf32> to vector<8x32xbf16>
    %c0_9 = arith.constant 0 : index
    %c0_10 = arith.constant 0 : index
    %13 = vector.load %arg4[%c0_9, %c0_10] : memref<32x512xbf16, #tpu.memory_space<vmem>>, vector<32x512xbf16>
    %cst_11 = arith.constant dense<0.000000e+00> : vector<8x512xf32>
    %14 = tpu.matmul %12, %13, %cst_11 {dimension_numbers = #tpu.dot_dimension_numbers<[1], [0], [0], [1], [0, 0, 1, 1], [], []>} : vector<8x32xbf16>, vector<32x512xbf16>, vector<8x512xf32> -> vector<8x512xf32>
    %c0_12 = arith.constant 0 : index
    %c0_13 = arith.constant 0 : index
    %15 = vector.load %arg5[%c0_12, %c0_13] : memref<1x512xf32, #tpu.memory_space<vmem>>, vector<1x512xf32>
    %16 = vector.broadcast %15 : vector<1x512xf32> to vector<8x512xf32>
    %17 = arith.addf %14, %16 : vector<8x512xf32>
    %cst_14 = arith.constant 0.000000e+00 : f32
    %18 = vector.broadcast %cst_14 : f32 to vector<8x512xf32>
    %19 = arith.maximumf %17, %18 : vector<8x512xf32>
    %20 = arith.truncf %19 : vector<8x512xf32> to vector<8x512xbf16>
    %c0_15 = arith.constant 0 : index
    %c0_16 = arith.constant 0 : index
    %21 = vector.load %arg6[%c0_15, %c0_16] : memref<512x256xbf16, #tpu.memory_space<vmem>>, vector<512x256xbf16>
    %cst_17 = arith.constant dense<0.000000e+00> : vector<8x256xf32>
    %22 = tpu.matmul %20, %21, %cst_17 {dimension_numbers = #tpu.dot_dimension_numbers<[1], [0], [0], [1], [0, 0, 1, 1], [], []>} : vector<8x512xbf16>, vector<512x256xbf16>, vector<8x256xf32> -> vector<8x256xf32>
    %c0_18 = arith.constant 0 : index
    %c0_19 = arith.constant 0 : index
    %23 = vector.load %arg7[%c0_18, %c0_19] : memref<1x256xf32, #tpu.memory_space<vmem>>, vector<1x256xf32>
    %24 = vector.broadcast %23 : vector<1x256xf32> to vector<8x256xf32>
    %25 = arith.addf %22, %24 : vector<8x256xf32>
    %cst_20 = arith.constant 0.000000e+00 : f32
    %26 = vector.broadcast %cst_20 : f32 to vector<8x256xf32>
    %27 = arith.maximumf %25, %26 : vector<8x256xf32>
    %28 = arith.truncf %27 : vector<8x256xf32> to vector<8x256xbf16>
    %c0_21 = arith.constant 0 : index
    %c0_22 = arith.constant 0 : index
    %29 = vector.load %arg8[%c0_21, %c0_22] : memref<256x128xbf16, #tpu.memory_space<vmem>>, vector<256x128xbf16>
    %cst_23 = arith.constant dense<0.000000e+00> : vector<8x128xf32>
    %30 = tpu.matmul %28, %29, %cst_23 {dimension_numbers = #tpu.dot_dimension_numbers<[1], [0], [0], [1], [0, 0, 1, 1], [], []>} : vector<8x256xbf16>, vector<256x128xbf16>, vector<8x128xf32> -> vector<8x128xf32>
    %c0_24 = arith.constant 0 : index
    %c0_25 = arith.constant 0 : index
    %31 = vector.load %arg9[%c0_24, %c0_25] : memref<1x128xf32, #tpu.memory_space<vmem>>, vector<1x128xf32>
    %32 = vector.broadcast %31 : vector<1x128xf32> to vector<8x128xf32>
    %33 = arith.addf %30, %32 : vector<8x128xf32>
    %cst_26 = arith.constant 0.000000e+00 : f32
    %34 = vector.broadcast %cst_26 : f32 to vector<8x128xf32>
    %35 = arith.maximumf %33, %34 : vector<8x128xf32>
    %36 = arith.truncf %35 : vector<8x128xf32> to vector<8x128xbf16>
    %c0_27 = arith.constant 0 : index
    %c0_28 = arith.constant 0 : index
    %37 = vector.load %arg10[%c0_27, %c0_28] : memref<128x128xbf16, #tpu.memory_space<vmem>>, vector<128x128xbf16>
    %cst_29 = arith.constant dense<0.000000e+00> : vector<8x128xf32>
    %38 = tpu.matmul %36, %37, %cst_29 {dimension_numbers = #tpu.dot_dimension_numbers<[1], [0], [0], [1], [0, 0, 1, 1], [], []>} : vector<8x128xbf16>, vector<128x128xbf16>, vector<8x128xf32> -> vector<8x128xf32>
    %c0_30 = arith.constant 0 : index
    %c0_31 = arith.constant 0 : index
    %39 = vector.load %arg11[%c0_30, %c0_31] : memref<1x128xf32, #tpu.memory_space<vmem>>, vector<1x128xf32>
    %40 = vector.broadcast %39 : vector<1x128xf32> to vector<8x128xf32>
    %41 = arith.addf %38, %40 : vector<8x128xf32>
    %c0_32 = arith.constant 0 : index
    %c0_33 = arith.constant 0 : index
    %42 = vector.load %arg12[%c0_32, %c0_33] : memref<8x128xf32, #tpu.memory_space<vmem>>, vector<8x128xf32>
    tpu.vector_store %arg12[%c0_32, %c0_33], %41 {strides = array<i32>} : memref<8x128xf32, #tpu.memory_space<vmem>>, vector<8x128xf32>,
    %cst_34 = arith.constant dense<0xFF800000> : vector<8xf32>
    %43 = vector.multi_reduction <maximumf>, %41, %cst_34 [1] : vector<8x128xf32> to vector<8xf32>
    %44 = vector.shape_cast %43 : vector<8xf32> to vector<8x1xf32>
    %45 = vector.broadcast %44 : vector<8x1xf32> to vector<8x128xf32>
    %46 = arith.subf %41, %45 : vector<8x128xf32>
    %47 = math.exp %46 : vector<8x128xf32>
    %cst_35 = arith.constant dense<0.000000e+00> : vector<8xf32>
    %48 = vector.multi_reduction <add>, %47, %cst_35 [1] : vector<8x128xf32> to vector<8xf32>
    %49 = vector.shape_cast %48 : vector<8xf32> to vector<8x1xf32>
    %50 = tpu.reciprocal %49 {approx = true} : vector<8x1xf32> -> vector<8x1xf32>
    %51 = vector.broadcast %50 : vector<8x1xf32> to vector<8x128xf32>
    %52 = arith.mulf %47, %51 : vector<8x128xf32>
    %c0_36 = arith.constant 0 : index
    %c0_37 = arith.constant 0 : index
    %53 = vector.load %arg13[%c0_36, %c0_37] : memref<8x128xf32, #tpu.memory_space<vmem>>, vector<8x128xf32>
    tpu.vector_store %arg13[%c0_36, %c0_37], %52 {strides = array<i32>} : memref<8x128xf32, #tpu.memory_space<vmem>>, vector<8x128xf32>,
    return
  }
}

</mosaic_0001>

<llo_original>
// kernel: tpu_custom_call.1
$region0: #{tpu_custom_call.1}
  #allocation0 [shape = 'u32[]', space=smem, size = 0x4, offset = 0x4, fixed_abs, tag = 'smem constant byte address 0x4 - core index']
  #allocation1 [shape = 'u32[72,128]{1,0:T(1,128)}', space=vmem, size = 0x9000, scoped, tag = 'internal scratch']
  %s0 = inlined_call_operand.vmem [shape: f32[512,4], index: 0, kind: input, shape index: {}]
  %s1 = inlined_call_operand.vmem [shape: bf16[8,512], index: 1, kind: input, shape index: {}]
  %s2 = inlined_call_operand.hbm [shape: bf16[4,32], index: 2, kind: input, shape index: {}]
  %s3 = inlined_call_operand.vmem [shape: f32[1,32], index: 3, kind: input, shape index: {}]
  %s4 = inlined_call_operand.hbm [shape: bf16[32,512], index: 4, kind: input, shape index: {}]
  %s5 = inlined_call_operand.vmem [shape: f32[1,512], index: 5, kind: input, shape index: {}]
  %s6 = inlined_call_operand.vmem [shape: bf16[512,256], index: 6, kind: input, shape index: {}]
  %s7 = inlined_call_operand.hbm [shape: f32[1,256], index: 7, kind: input, shape index: {}]
  %s8 = inlined_call_operand.hbm [shape: bf16[256,128], index: 8, kind: input, shape index: {}]
  %s9 = inlined_call_operand.hbm [shape: f32[1,128], index: 9, kind: input, shape index: {}]
  %s10 = inlined_call_operand.hbm [shape: bf16[128,128], index: 10, kind: input, shape index: {}]
  %s11 = inlined_call_operand.hbm [shape: f32[1,128], index: 11, kind: input, shape index: {}]
  %s12 = inlined_call_operand.hbm [shape: f32[8,128], index: 12, kind: output, shape index: {0}]
  %s13 = inlined_call_operand.hbm [shape: f32[8,128], index: 13, kind: output, shape index: {1}]
  %14 = xla_tuple %s12, %s13
  %s15 = sld [smem:[#allocation0]]
  $region94: #{tpu_custom_call.1} parent=0
    _
  %s17 = ssub.s32 1, %s15
  %s18 = scalar_select 0, %s17, %s15
  $region1: #{tpu_custom_call.1} parent=0
    #allocation2 [shape = 'u8[1024]{0}', space=vmem, size = 0x400, scoped, tag = 'input window, operand 2, single buffered']
    #allocation3 [shape = 's32[1]{0}', space=sflag, size = 0x4, scoped, tag = 'scoped memory for tpu_custom_call.1']
    #allocation4 [shape = 's32[1]{0}', space=sflag, size = 0x4, scoped, tag = 'scoped memory for tpu_custom_call.1']
    #allocation5 [shape = 'u8[32768]{0}', space=vmem, size = 0x8000, scoped, tag = 'input window, operand 4, single buffered']
    #allocation6 [shape = 's32[1]{0}', space=sflag, size = 0x4, scoped, tag = 'scoped memory for tpu_custom_call.1']
    #allocation7 [shape = 'u8[1024]{0}', space=vmem, size = 0x400, scoped, tag = 'input window, operand 7, single buffered']
    #allocation8 [shape = 'u8[65536]{0}', space=vmem, size = 0x10000, scoped, tag = 'input window, operand 8, single buffered']
    #allocation9 [shape = 's32[1]{0}', space=sflag, size = 0x4, scoped, tag = 'scoped memory for tpu_custom_call.1']
    #allocation10 [shape = 'u8[512]{0}', space=vmem, size = 0x400, scoped, tag = 'input window, operand 9, single buffered']
    #allocation11 [shape = 'u8[32768]{0}', space=vmem, size = 0x8000, scoped, tag = 'input window, operand 10, single buffered']
    #allocation12 [shape = 's32[1]{0}', space=sflag, size = 0x4, scoped, tag = 'scoped memory for tpu_custom_call.1']
    #allocation13 [shape = 'u8[512]{0}', space=vmem, size = 0x400, scoped, tag = 'input window, operand 11, single buffered']
    #allocation14 [shape = 'u8[4096]{0}', space=vmem, size = 0x1000, scoped, tag = 'output window, operand 0, single buffered']
    #allocation15 [shape = 'u8[4096]{0}', space=vmem, size = 0x1000, scoped, tag = 'output window, operand 1, single buffered']
    #allocation16 [shape = 's32[1]{0}', space=sflag, size = 0x4, scoped, tag = 'scoped memory for tpu_custom_call.1']
    %19 = vsyncpa [#allocation3], 0
    %20 = vsyncpa [#allocation6], 0
    %21 = vsyncpa [#allocation9], 0
    %22 = vsyncpa [#allocation12], 0
    %23 = vsyncpa [#allocation4], 0
    %24 = vsyncpa [#allocation16], 0
    // Predicated region
    $region2: #{tpu_custom_call.1} parent=1 // pred_check
      _
    $region3: #{tpu_custom_call.1} parent=1 // pred_check_branch
      %26 = sbr.rel (0) target = $region5
    $region4: #{tpu_custom_call.1} parent=1 // pred_region
      _
    $region5: #{tpu_custom_call.1} parent=1 // pred_fallthru
      _
    // Predicated region
    $region6: #{tpu_custom_call.1} parent=1 // pred_check
      _
    $region7: #{tpu_custom_call.1} parent=1 // pred_check_branch
      %28 = sbr.rel (0) target = $region9
    $region8: #{tpu_custom_call.1} parent=1 // pred_region
      _
    $region9: #{tpu_custom_call.1} parent=1 // pred_fallthru
      _
    // Predicated region
    $region10: #{tpu_custom_call.1} parent=1 // pred_check
      _
    $region11: #{tpu_custom_call.1} parent=1 // pred_check_branch
      %30 = sbr.rel (0) target = $region13
    $region12: #{tpu_custom_call.1} parent=1 // pred_region
      %32 = vsyncadd [#allocation3], 0
      %s34 = sshll.u32 %s2, 4
      %s35 = int_to_ptr.hbm [resolvable:$true] %s34
      %s36 = sshll.u32 [#allocation2], 4
      %s37 = int_to_ptr.vmem [resolvable:$true] %s36
      %39 = dma.hbm_to_vmem [thread:$0]  %s35, 32, %s37, [#allocation3]
    $region13: #{tpu_custom_call.1} parent=1 // pred_fallthru
      _
    // Predicated region
    $region14: #{tpu_custom_call.1} parent=1 // pred_check
      _
    $region15: #{tpu_custom_call.1} parent=1 // pred_check_branch
      %41 = sbr.rel (0) target = $region17
    $region16: #{tpu_custom_call.1} parent=1 // pred_region
      _
    $region17: #{tpu_custom_call.1} parent=1 // pred_fallthru
      _
    // Predicated region
    $region18: #{tpu_custom_call.1} parent=1 // pred_check
      _
    $region19: #{tpu_custom_call.1} parent=1 // pred_check_branch
      %43 = sbr.rel (0) target = $region21
    $region20: #{tpu_custom_call.1} parent=1 // pred_region
      %45 = vsyncadd [#allocation6], 0
      %s46 = sshll.u32 %s4, 4
      %s47 = int_to_ptr.hbm [resolvable:$true] %s46
      %s48 = sshll.u32 [#allocation5], 4
      %s49 = int_to_ptr.vmem [resolvable:$true] %s48
      %54 = dma.hbm_to_vmem [thread:$0]  %s47, 1024, %s49, [#allocation6], 256, 256, 16
    $region21: #{tpu_custom_call.1} parent=1 // pred_fallthru
      _
    // Predicated region
    $region22: #{tpu_custom_call.1} parent=1 // pred_check
      _
    $region23: #{tpu_custom_call.1} parent=1 // pred_check_branch
      %56 = sbr.rel (0) target = $region25
    $region24: #{tpu_custom_call.1} parent=1 // pred_region
      _
    $region25: #{tpu_custom_call.1} parent=1 // pred_fallthru
      _
    // Predicated region
    $region26: #{tpu_custom_call.1} parent=1 // pred_check
      _
    $region27: #{tpu_custom_call.1} parent=1 // pred_check_branch
      %58 = sbr.rel (0) target = $region29
    $region28: #{tpu_custom_call.1} parent=1 // pred_region
      _
    $region29: #{tpu_custom_call.1} parent=1 // pred_fallthru
      _
    // Predicated region
    $region30: #{tpu_custom_call.1} parent=1 // pred_check
      _
    $region31: #{tpu_custom_call.1} parent=1 // pred_check_branch
      %60 = sbr.rel (0) target = $region33
    $region32: #{tpu_custom_call.1} parent=1 // pred_region
      %62 = vsyncadd [#allocation6], 0
      %s64 = sshll.u32 %s7, 4
      %s65 = int_to_ptr.hbm [resolvable:$true] %s64
      %s66 = sshll.u32 [#allocation7], 4
      %s67 = int_to_ptr.vmem [resolvable:$true] %s66
      %69 = dma.hbm_to_vmem [thread:$0]  %s65, 32, %s67, [#allocation6]
    $region33: #{tpu_custom_call.1} parent=1 // pred_fallthru
      _
    // Predicated region
    $region34: #{tpu_custom_call.1} parent=1 // pred_check
      _
    $region35: #{tpu_custom_call.1} parent=1 // pred_check_branch
      %71 = sbr.rel (0) target = $region37
    $region36: #{tpu_custom_call.1} parent=1 // pred_region
      %73 = vsyncadd [#allocation9], 0
      %s74 = sshll.u32 %s8, 4
      %s75 = int_to_ptr.hbm [resolvable:$true] %s74
      %s76 = sshll.u32 [#allocation8], 4
      %s77 = int_to_ptr.vmem [resolvable:$true] %s76
      %82 = dma.hbm_to_vmem [thread:$0]  %s75, 2048, %s77, [#allocation9], 64, 64, 4
    $region37: #{tpu_custom_call.1} parent=1 // pred_fallthru
      _
    // Predicated region
    $region38: #{tpu_custom_call.1} parent=1 // pred_check
      _
    $region39: #{tpu_custom_call.1} parent=1 // pred_check_branch
      %84 = sbr.rel (0) target = $region41
    $region40: #{tpu_custom_call.1} parent=1 // pred_region
      %86 = vsyncadd [#allocation9], 0
      %s88 = sshll.u32 %s9, 4
      %s89 = int_to_ptr.hbm [resolvable:$true] %s88
      %s90 = sshll.u32 [#allocation10], 4
      %s91 = int_to_ptr.vmem [resolvable:$true] %s90
      %93 = dma.hbm_to_vmem [thread:$0]  %s89, 16, %s91, [#allocation9]
    $region41: #{tpu_custom_call.1} parent=1 // pred_fallthru
      _
    // Predicated region
    $region42: #{tpu_custom_call.1} parent=1 // pred_check
      _
    $region43: #{tpu_custom_call.1} parent=1 // pred_check_branch
      %95 = sbr.rel (0) target = $region45
    $region44: #{tpu_custom_call.1} parent=1 // pred_region
      %97 = vsyncadd [#allocation12], 0
      %s98 = sshll.u32 %s10, 4
      %s99 = int_to_ptr.hbm [resolvable:$true] %s98
      %s100 = sshll.u32 [#allocation11], 4
      %s101 = int_to_ptr.vmem [resolvable:$true] %s100
      %106 = dma.hbm_to_vmem [thread:$0]  %s99, 1024, %s101, [#allocation12], 64, 64, 4
    $region45: #{tpu_custom_call.1} parent=1 // pred_fallthru
      _
    // Predicated region
    $region46: #{tpu_custom_call.1} parent=1 // pred_check
      _
    $region47: #{tpu_custom_call.1} parent=1 // pred_check_branch
      %108 = sbr.rel (0) target = $region49
    $region48: #{tpu_custom_call.1} parent=1 // pred_region
      %110 = vsyncadd [#allocation12], 0
      %s112 = sshll.u32 %s11, 4
      %s113 = int_to_ptr.hbm [resolvable:$true] %s112
      %s114 = sshll.u32 [#allocation13], 4
      %s115 = int_to_ptr.vmem [resolvable:$true] %s114
      %117 = dma.hbm_to_vmem [thread:$0]  %s113, 16, %s115, [#allocation12]
    $region49: #{tpu_custom_call.1} parent=1 // pred_fallthru
      _
    // Predicated region
    $region50: #{tpu_custom_call.1} parent=1 // pred_check
      _
    $region51: #{tpu_custom_call.1} parent=1 // pred_check_branch
      %119 = sbr.rel (0) target = $region53
    $region52: #{tpu_custom_call.1} parent=1 // pred_region
      %121 = dma.done [#allocation3], 32
    $region53: #{tpu_custom_call.1} parent=1 // pred_fallthru
      _
    // Predicated region
    $region54: #{tpu_custom_call.1} parent=1 // pred_check
      _
    $region55: #{tpu_custom_call.1} parent=1 // pred_check_branch
      %123 = sbr.rel (0) target = $region57
    $region56: #{tpu_custom_call.1} parent=1 // pred_region
      %125 = dma.done [#allocation6], 1024
    $region57: #{tpu_custom_call.1} parent=1 // pred_fallthru
      _
    // Predicated region
    $region58: #{tpu_custom_call.1} parent=1 // pred_check
      _
    $region59: #{tpu_custom_call.1} parent=1 // pred_check_branch
      %127 = sbr.rel (0) target = $region61
    $region60: #{tpu_custom_call.1} parent=1 // pred_region
      %129 = dma.done [#allocation6], 32
    $region61: #{tpu_custom_call.1} parent=1 // pred_fallthru
      _
    // Predicated region
    $region62: #{tpu_custom_call.1} parent=1 // pred_check
      _
    $region63: #{tpu_custom_call.1} parent=1 // pred_check_branch
      %131 = sbr.rel (0) target = $region65
    $region64: #{tpu_custom_call.1} parent=1 // pred_region
      %133 = dma.done [#allocation9], 2048
    $region65: #{tpu_custom_call.1} parent=1 // pred_fallthru
      _
    // Predicated region
    $region66: #{tpu_custom_call.1} parent=1 // pred_check
      _
    $region67: #{tpu_custom_call.1} parent=1 // pred_check_branch
      %135 = sbr.rel (0) target = $region69
    $region68: #{tpu_custom_call.1} parent=1 // pred_region
      %137 = dma.done [#allocation9], 16
    $region69: #{tpu_custom_call.1} parent=1 // pred_fallthru
      _
    // Predicated region
    $region70: #{tpu_custom_call.1} parent=1 // pred_check
      _
    $region71: #{tpu_custom_call.1} parent=1 // pred_check_branch
      %139 = sbr.rel (0) target = $region73
    $region72: #{tpu_custom_call.1} parent=1 // pred_region
      %141 = dma.done [#allocation12], 1024
    $region73: #{tpu_custom_call.1} parent=1 // pred_fallthru
      _
    // Predicated region
    $region74: #{tpu_custom_call.1} parent=1 // pred_check
      _
    $region75: #{tpu_custom_call.1} parent=1 // pred_check_branch
      %143 = sbr.rel (0) target = $region77
    $region76: #{tpu_custom_call.1} parent=1 // pred_region
      %145 = dma.done [#allocation12], 16
    $region77: #{tpu_custom_call.1} parent=1 // pred_fallthru
      _
    %v147 = vld [vmem:[%s0] sm:$0xff]
    %v148 = vld [vmem:[%s0 + $0x8] sm:$0xff]
    %v149 = vld [vmem:[%s0 + $0x10] sm:$0xff]
    %v150 = vld [vmem:[%s0 + $0x18] sm:$0xff]
    %v151 = vld [vmem:[%s0 + $0x20] sm:$0xff]
    %v152 = vld [vmem:[%s0 + $0x28] sm:$0xff]
    %v153 = vld [vmem:[%s0 + $0x30] sm:$0xff]
    %v154 = vld [vmem:[%s0 + $0x38] sm:$0xff]
    %v155 = vld [vmem:[%s0 + $0x40] sm:$0xff]
    %v156 = vld [vmem:[%s0 + $0x48] sm:$0xff]
    %v157 = vld [vmem:[%s0 + $0x50] sm:$0xff]
    %v158 = vld [vmem:[%s0 + $0x58] sm:$0xff]
    %v159 = vld [vmem:[%s0 + $0x60] sm:$0xff]
    %v160 = vld [vmem:[%s0 + $0x68] sm:$0xff]
    %v161 = vld [vmem:[%s0 + $0x70] sm:$0xff]
    %v162 = vld [vmem:[%s0 + $0x78] sm:$0xff]
    %v163 = vld [vmem:[%s0 + $0x80] sm:$0xff]
    %v164 = vld [vmem:[%s0 + $0x88] sm:$0xff]
    %v165 = vld [vmem:[%s0 + $0x90] sm:$0xff]
    %v166 = vld [vmem:[%s0 + $0x98] sm:$0xff]
    %v167 = vld [vmem:[%s0 + $0xa0] sm:$0xff]
    %v168 = vld [vmem:[%s0 + $0xa8] sm:$0xff]
    %v169 = vld [vmem:[%s0 + $0xb0] sm:$0xff]
    %v170 = vld [vmem:[%s0 + $0xb8] sm:$0xff]
    %v171 = vld [vmem:[%s0 + $0xc0] sm:$0xff]
    %v172 = vld [vmem:[%s0 + $0xc8] sm:$0xff]
    %v173 = vld [vmem:[%s0 + $0xd0] sm:$0xff]
    %v174 = vld [vmem:[%s0 + $0xd8] sm:$0xff]
    %v175 = vld [vmem:[%s0 + $0xe0] sm:$0xff]
    %v176 = vld [vmem:[%s0 + $0xe8] sm:$0xff]
    %v177 = vld [vmem:[%s0 + $0xf0] sm:$0xff]
    %v178 = vld [vmem:[%s0 + $0xf8] sm:$0xff]
    %v179 = vld [vmem:[%s0 + $0x100] sm:$0xff]
    %v180 = vld [vmem:[%s0 + $0x108] sm:$0xff]
    %v181 = vld [vmem:[%s0 + $0x110] sm:$0xff]
    %v182 = vld [vmem:[%s0 + $0x118] sm:$0xff]
    %v183 = vld [vmem:[%s0 + $0x120] sm:$0xff]
    %v184 = vld [vmem:[%s0 + $0x128] sm:$0xff]
    %v185 = vld [vmem:[%s0 + $0x130] sm:$0xff]
    %v186 = vld [vmem:[%s0 + $0x138] sm:$0xff]
    %v187 = vld [vmem:[%s0 + $0x140] sm:$0xff]
    %v188 = vld [vmem:[%s0 + $0x148] sm:$0xff]
    %v189 = vld [vmem:[%s0 + $0x150] sm:$0xff]
    %v190 = vld [vmem:[%s0 + $0x158] sm:$0xff]
    %v191 = vld [vmem:[%s0 + $0x160] sm:$0xff]
    %v192 = vld [vmem:[%s0 + $0x168] sm:$0xff]
    %v193 = vld [vmem:[%s0 + $0x170] sm:$0xff]
    %v194 = vld [vmem:[%s0 + $0x178] sm:$0xff]
    %v195 = vld [vmem:[%s0 + $0x180] sm:$0xff]
    %v196 = vld [vmem:[%s0 + $0x188] sm:$0xff]
    %v197 = vld [vmem:[%s0 + $0x190] sm:$0xff]
    %v198 = vld [vmem:[%s0 + $0x198] sm:$0xff]
    %v199 = vld [vmem:[%s0 + $0x1a0] sm:$0xff]
    %v200 = vld [vmem:[%s0 + $0x1a8] sm:$0xff]
    %v201 = vld [vmem:[%s0 + $0x1b0] sm:$0xff]
    %v202 = vld [vmem:[%s0 + $0x1b8] sm:$0xff]
    %v203 = vld [vmem:[%s0 + $0x1c0] sm:$0xff]
    %v204 = vld [vmem:[%s0 + $0x1c8] sm:$0xff]
    %v205 = vld [vmem:[%s0 + $0x1d0] sm:$0xff]
    %v206 = vld [vmem:[%s0 + $0x1d8] sm:$0xff]
    %v207 = vld [vmem:[%s0 + $0x1e0] sm:$0xff]
    %v208 = vld [vmem:[%s0 + $0x1e8] sm:$0xff]
    %v209 = vld [vmem:[%s0 + $0x1f0] sm:$0xff]
    %v210 = vld [vmem:[%s0 + $0x1f8] sm:$0xff]
    %v211 = vpack.c.bf16 %v148, %v147
    %v212 = vpack.c.bf16 %v150, %v149
    %v213 = vpack.c.bf16 %v152, %v151
    %v214 = vpack.c.bf16 %v154, %v153
    %v215 = vpack.c.bf16 %v156, %v155
    %v216 = vpack.c.bf16 %v158, %v157
    %v217 = vpack.c.bf16 %v160, %v159
    %v218 = vpack.c.bf16 %v162, %v161
    %v219 = vpack.c.bf16 %v164, %v163
    %v220 = vpack.c.bf16 %v166, %v165
    %v221 = vpack.c.bf16 %v168, %v167
    %v222 = vpack.c.bf16 %v170, %v169
    %v223 = vpack.c.bf16 %v172, %v171
    %v224 = vpack.c.bf16 %v174, %v173
    %v225 = vpack.c.bf16 %v176, %v175
    %v226 = vpack.c.bf16 %v178, %v177
    %v227 = vpack.c.bf16 %v180, %v179
    %v228 = vpack.c.bf16 %v182, %v181
    %v229 = vpack.c.bf16 %v184, %v183
    %v230 = vpack.c.bf16 %v186, %v185
    %v231 = vpack.c.bf16 %v188, %v187
    %v232 = vpack.c.bf16 %v190, %v189
    %v233 = vpack.c.bf16 %v192, %v191
    %v234 = vpack.c.bf16 %v194, %v193
    %v235 = vpack.c.bf16 %v196, %v195
    %v236 = vpack.c.bf16 %v198, %v197
    %v237 = vpack.c.bf16 %v200, %v199
    %v238 = vpack.c.bf16 %v202, %v201
    %v239 = vpack.c.bf16 %v204, %v203
    %v240 = vpack.c.bf16 %v206, %v205
    %v241 = vpack.c.bf16 %v208, %v207
    %v242 = vpack.c.bf16 %v210, %v209
    %v243 = vld [vmem:[#allocation2] sm:$0x3]
    %v244 = vld [vmem:[%s3] sm:$0x1]
    %v246 = vperm.slane %v244, 0
    %vm248 = vcmask 31744
    %v250 = vsel %vm248, %v211, 0
    %v253 = vsel %vm248, %v212, 0
    %v256 = vsel %vm248, %v213, 0
    %v259 = vsel %vm248, %v214, 0
    %v262 = vsel %vm248, %v215, 0
    %v265 = vsel %vm248, %v216, 0
    %v268 = vsel %vm248, %v217, 0
    %v271 = vsel %vm248, %v218, 0
    %v274 = vsel %vm248, %v219, 0
    %v277 = vsel %vm248, %v220, 0
    %v280 = vsel %vm248, %v221, 0
    %v283 = vsel %vm248, %v222, 0
    %v286 = vsel %vm248, %v223, 0
    %v289 = vsel %vm248, %v224, 0
    %v292 = vsel %vm248, %v225, 0
    %v295 = vsel %vm248, %v226, 0
    %v298 = vsel %vm248, %v227, 0
    %v301 = vsel %vm248, %v228, 0
    %v304 = vsel %vm248, %v229, 0
    %v307 = vsel %vm248, %v230, 0
    %v310 = vsel %vm248, %v231, 0
    %v313 = vsel %vm248, %v232, 0
    %v316 = vsel %vm248, %v233, 0
    %v319 = vsel %vm248, %v234, 0
    %v322 = vsel %vm248, %v235, 0
    %v325 = vsel %vm248, %v236, 0
    %v328 = vsel %vm248, %v237, 0
    %v331 = vsel %vm248, %v238, 0
    %v334 = vsel %vm248, %v239, 0
    %v337 = vsel %vm248, %v240, 0
    %v340 = vsel %vm248, %v241, 0
    %v343 = vsel %vm248, %v242, 0
    %vm345 = vcmask 1041408
    %v347 = vsel %vm345, %v243, 0
    %349 = vmatpush.bf16.msra.mxu0 0
    %350 = vmatpush.bf16.msra.mxu0 0
    %351 = vmatpush.bf16.msra.mxu0 0
    %352 = vmatpush.bf16.msra.mxu0 0
    %353 = vmatpush.bf16.msra.mxu0 0
    %354 = vmatpush.bf16.msra.mxu0 0
    %355 = vmatpush.bf16.msra.mxu0 0
    %356 = vmatpush.bf16.msra.mxu0 %v347
    %357 = vmatmul.bf16.gmra.mxu0 %v250
    %v358 = vpop.f32.mrf.mxu0
    %v359 = vadd.f32 %v246, %v358
    %v360 = vpop.f32.mrf.mxu0
    %v361 = vadd.f32 %v246, %v360
    %362 = vmatmul.bf16.gmra.mxu0 %v253
    %v363 = vpop.f32.mrf.mxu0
    %v364 = vadd.f32 %v246, %v363
    %v365 = vpop.f32.mrf.mxu0
    %v366 = vadd.f32 %v246, %v365
    %367 = vmatmul.bf16.gmra.mxu0 %v256
    %v368 = vpop.f32.mrf.mxu0
    %v369 = vadd.f32 %v246, %v368
    %v370 = vpop.f32.mrf.mxu0
    %v371 = vadd.f32 %v246, %v370
    %372 = vmatmul.bf16.gmra.mxu0 %v259
    %v373 = vpop.f32.mrf.mxu0
    %v374 = vadd.f32 %v246, %v373
    %v375 = vpop.f32.mrf.mxu0
    %v376 = vadd.f32 %v246, %v375
    %377 = vmatmul.bf16.gmra.mxu0 %v262
    %v378 = vpop.f32.mrf.mxu0
    %v379 = vadd.f32 %v246, %v378
    %v380 = vpop.f32.mrf.mxu0
    %v381 = vadd.f32 %v246, %v380
    %382 = vmatmul.bf16.gmra.mxu0 %v265
    %v383 = vpop.f32.mrf.mxu0
    %v384 = vadd.f32 %v246, %v383
    %v385 = vpop.f32.mrf.mxu0
    %v386 = vadd.f32 %v246, %v385
    %387 = vmatmul.bf16.gmra.mxu0 %v268
    %v388 = vpop.f32.mrf.mxu0
    %v389 = vadd.f32 %v246, %v388
    %v390 = vpop.f32.mrf.mxu0
    %v391 = vadd.f32 %v246, %v390
    %392 = vmatmul.bf16.gmra.mxu0 %v271
    %v393 = vpop.f32.mrf.mxu0
    %v394 = vadd.f32 %v246, %v393
    %v395 = vpop.f32.mrf.mxu0
    %v396 = vadd.f32 %v246, %v395
    %397 = vmatmul.bf16.gmra.mxu0 %v274
    %v398 = vpop.f32.mrf.mxu0
    %v399 = vadd.f32 %v246, %v398
    %v400 = vpop.f32.mrf.mxu0
    %v401 = vadd.f32 %v246, %v400
    %402 = vmatmul.bf16.gmra.mxu0 %v277
    %v403 = vpop.f32.mrf.mxu0
    %v404 = vadd.f32 %v246, %v403
    %v405 = vpop.f32.mrf.mxu0
    %v406 = vadd.f32 %v246, %v405
    %407 = vmatmul.bf16.gmra.mxu0 %v280
    %v408 = vpop.f32.mrf.mxu0
    %v409 = vadd.f32 %v246, %v408
    %v410 = vpop.f32.mrf.mxu0
    %v411 = vadd.f32 %v246, %v410
    %412 = vmatmul.bf16.gmra.mxu0 %v283
    %v413 = vpop.f32.mrf.mxu0
    %v414 = vadd.f32 %v246, %v413
    %v415 = vpop.f32.mrf.mxu0
    %v416 = vadd.f32 %v246, %v415
    %417 = vmatmul.bf16.gmra.mxu0 %v286
    %v418 = vpop.f32.mrf.mxu0
    %v419 = vadd.f32 %v246, %v418
    %v420 = vpop.f32.mrf.mxu0
    %v421 = vadd.f32 %v246, %v420
    %422 = vmatmul.bf16.gmra.mxu0 %v289
    %v423 = vpop.f32.mrf.mxu0
    %v424 = vadd.f32 %v246, %v423
    %v425 = vpop.f32.mrf.mxu0
    %v426 = vadd.f32 %v246, %v425
    %427 = vmatmul.bf16.gmra.mxu0 %v292
    %v428 = vpop.f32.mrf.mxu0
    %v429 = vadd.f32 %v246, %v428
    %v430 = vpop.f32.mrf.mxu0
    %v431 = vadd.f32 %v246, %v430
    %432 = vmatmul.bf16.gmra.mxu0 %v295
    %v433 = vpop.f32.mrf.mxu0
    %v434 = vadd.f32 %v246, %v433
    %v435 = vpop.f32.mrf.mxu0
    %v436 = vadd.f32 %v246, %v435
    %437 = vmatmul.bf16.gmra.mxu0 %v298
    %v438 = vpop.f32.mrf.mxu0
    %v439 = vadd.f32 %v246, %v438
    %v440 = vpop.f32.mrf.mxu0
    %v441 = vadd.f32 %v246, %v440
    %442 = vmatmul.bf16.gmra.mxu0 %v301
    %v443 = vpop.f32.mrf.mxu0
    %v444 = vadd.f32 %v246, %v443
    %v445 = vpop.f32.mrf.mxu0
    %v446 = vadd.f32 %v246, %v445
    %447 = vmatmul.bf16.gmra.mxu0 %v304
    %v448 = vpop.f32.mrf.mxu0
    %v449 = vadd.f32 %v246, %v448
    %v450 = vpop.f32.mrf.mxu0
    %v451 = vadd.f32 %v246, %v450
    %452 = vmatmul.bf16.gmra.mxu0 %v307
    %v453 = vpop.f32.mrf.mxu0
    %v454 = vadd.f32 %v246, %v453
    %v455 = vpop.f32.mrf.mxu0
    %v456 = vadd.f32 %v246, %v455
    %457 = vmatmul.bf16.gmra.mxu0 %v310
    %v458 = vpop.f32.mrf.mxu0
    %v459 = vadd.f32 %v246, %v458
    %v460 = vpop.f32.mrf.mxu0
    %v461 = vadd.f32 %v246, %v460
    %462 = vmatmul.bf16.gmra.mxu0 %v313
    %v463 = vpop.f32.mrf.mxu0
    %v464 = vadd.f32 %v246, %v463
    %v465 = vpop.f32.mrf.mxu0
    %v466 = vadd.f32 %v246, %v465
    %467 = vmatmul.bf16.gmra.mxu0 %v316
    %v468 = vpop.f32.mrf.mxu0
    %v469 = vadd.f32 %v246, %v468
    %v470 = vpop.f32.mrf.mxu0
    %v471 = vadd.f32 %v246, %v470
    %472 = vmatmul.bf16.gmra.mxu0 %v319
    %v473 = vpop.f32.mrf.mxu0
    %v474 = vadd.f32 %v246, %v473
    %v475 = vpop.f32.mrf.mxu0
    %v476 = vadd.f32 %v246, %v475
    %477 = vmatmul.bf16.gmra.mxu0 %v322
    %v478 = vpop.f32.mrf.mxu0
    %v479 = vadd.f32 %v246, %v478
    %v480 = vpop.f32.mrf.mxu0
    %v481 = vadd.f32 %v246, %v480
    %482 = vmatmul.bf16.gmra.mxu0 %v325
    %v483 = vpop.f32.mrf.mxu0
    %v484 = vadd.f32 %v246, %v483
    %v485 = vpop.f32.mrf.mxu0
    %v486 = vadd.f32 %v246, %v485
    %487 = vmatmul.bf16.gmra.mxu0 %v328
    %v488 = vpop.f32.mrf.mxu0
    %v489 = vadd.f32 %v246, %v488
    %v490 = vpop.f32.mrf.mxu0
    %v491 = vadd.f32 %v246, %v490
    %492 = vmatmul.bf16.gmra.mxu0 %v331
    %v493 = vpop.f32.mrf.mxu0
    %v494 = vadd.f32 %v246, %v493
    %v495 = vpop.f32.mrf.mxu0
    %v496 = vadd.f32 %v246, %v495
    %497 = vmatmul.bf16.gmra.mxu0 %v334
    %v498 = vpop.f32.mrf.mxu0
    %v499 = vadd.f32 %v246, %v498
    %v500 = vpop.f32.mrf.mxu0
    %v501 = vadd.f32 %v246, %v500
    %502 = vmatmul.bf16.gmra.mxu0 %v337
    %v503 = vpop.f32.mrf.mxu0
    %v504 = vadd.f32 %v246, %v503
    %v505 = vpop.f32.mrf.mxu0
    %v506 = vadd.f32 %v246, %v505
    %507 = vmatmul.bf16.gmra.mxu0 %v340
    %v508 = vpop.f32.mrf.mxu0
    %v509 = vadd.f32 %v246, %v508
    %v510 = vpop.f32.mrf.mxu0
    %v511 = vadd.f32 %v246, %v510
    %512 = vmatmul.bf16.gmra.mxu0 %v343
    %v513 = vpop.f32.mrf.mxu0
    %v514 = vadd.f32 %v246, %v513
    %v515 = vpop.f32.mrf.mxu0
    %v516 = vadd.f32 %v246, %v515
    %517 = vdwg.mxu0
    %v518 = vmax.f32 %v359, 0.0
    %v519 = vmax.f32 %v361, 0.0
    %v520 = vmax.f32 %v364, 0.0
    %v521 = vmax.f32 %v366, 0.0
    %v522 = vmax.f32 %v369, 0.0
    %v523 = vmax.f32 %v371, 0.0
    %v524 = vmax.f32 %v374, 0.0
    %v525 = vmax.f32 %v376, 0.0
    %v526 = vmax.f32 %v379, 0.0
    %v527 = vmax.f32 %v381, 0.0
    %v528 = vmax.f32 %v384, 0.0
    %v529 = vmax.f32 %v386, 0.0
    %v530 = vmax.f32 %v389, 0.0
    %v531 = vmax.f32 %v391, 0.0
    %v532 = vmax.f32 %v394, 0.0
    %v533 = vmax.f32 %v396, 0.0
    %v534 = vmax.f32 %v399, 0.0
    %v535 = vmax.f32 %v401, 0.0
    %v536 = vmax.f32 %v404, 0.0
    %v537 = vmax.f32 %v406, 0.0
    %v538 = vmax.f32 %v409, 0.0
    %v539 = vmax.f32 %v411, 0.0
    %v540 = vmax.f32 %v414, 0.0
    %v541 = vmax.f32 %v416, 0.0
    %v542 = vmax.f32 %v419, 0.0
    %v543 = vmax.f32 %v421, 0.0
    %v544 = vmax.f32 %v424, 0.0
    %v545 = vmax.f32 %v426, 0.0
    %v546 = vmax.f32 %v429, 0.0
    %v547 = vmax.f32 %v431, 0.0
    %v548 = vmax.f32 %v434, 0.0
    %v549 = vmax.f32 %v436, 0.0
    %v550 = vmax.f32 %v439, 0.0
    %v551 = vmax.f32 %v441, 0.0
    %v552 = vmax.f32 %v444, 0.0
    %v553 = vmax.f32 %v446, 0.0
    %v554 = vmax.f32 %v449, 0.0
    %v555 = vmax.f32 %v451, 0.0
    %v556 = vmax.f32 %v454, 0.0
    %v557 = vmax.f32 %v456, 0.0
    %v558 = vmax.f32 %v459, 0.0
    %v559 = vmax.f32 %v461, 0.0
    %v560 = vmax.f32 %v464, 0.0
    %v561 = vmax.f32 %v466, 0.0
    %v562 = vmax.f32 %v469, 0.0
    %v563 = vmax.f32 %v471, 0.0
    %v564 = vmax.f32 %v474, 0.0
    %v565 = vmax.f32 %v476, 0.0
    %v566 = vmax.f32 %v479, 0.0
    %v567 = vmax.f32 %v481, 0.0
    %v568 = vmax.f32 %v484, 0.0
    %v569 = vmax.f32 %v486, 0.0
    %v570 = vmax.f32 %v489, 0.0
    %v571 = vmax.f32 %v491, 0.0
    %v572 = vmax.f32 %v494, 0.0
    %v573 = vmax.f32 %v496, 0.0
    %v574 = vmax.f32 %v499, 0.0
    %v575 = vmax.f32 %v501, 0.0
    %v576 = vmax.f32 %v504, 0.0
    %v577 = vmax.f32 %v506, 0.0
    %v578 = vmax.f32 %v509, 0.0
    %v579 = vmax.f32 %v511, 0.0
    %v580 = vmax.f32 %v514, 0.0
    %v581 = vmax.f32 %v516, 0.0
    %v582 = vld [vmem:[%s1] sm:$0xff]
    %v583 = vld [vmem:[%s1 + $0x8] sm:$0xff]
    %v584 = vpack.c.bf16 %v519, %v518
    %v585 = vpack.c.bf16 %v521, %v520
    %v586 = vpack.c.bf16 %v523, %v522
    %v587 = vpack.c.bf16 %v525, %v524
    %v588 = vpack.c.bf16 %v527, %v526
    %v589 = vpack.c.bf16 %v529, %v528
    %v590 = vpack.c.bf16 %v531, %v530
    %v591 = vpack.c.bf16 %v533, %v532
    %v592 = vpack.c.bf16 %v535, %v534
    %v593 = vpack.c.bf16 %v537, %v536
    %v594 = vpack.c.bf16 %v539, %v538
    %v595 = vpack.c.bf16 %v541, %v540
    %v596 = vpack.c.bf16 %v543, %v542
    %v597 = vpack.c.bf16 %v545, %v544
    %v598 = vpack.c.bf16 %v547, %v546
    %v599 = vpack.c.bf16 %v549, %v548
    %v600 = vpack.c.bf16 %v551, %v550
    %v601 = vpack.c.bf16 %v553, %v552
    %v602 = vpack.c.bf16 %v555, %v554
    %v603 = vpack.c.bf16 %v557, %v556
    %v604 = vpack.c.bf16 %v559, %v558
    %v605 = vpack.c.bf16 %v561, %v560
    %v606 = vpack.c.bf16 %v563, %v562
    %v607 = vpack.c.bf16 %v565, %v564
    %v608 = vpack.c.bf16 %v567, %v566
    %v609 = vpack.c.bf16 %v569, %v568
    %v610 = vpack.c.bf16 %v571, %v570
    %v611 = vpack.c.bf16 %v573, %v572
    %v612 = vpack.c.bf16 %v575, %v574
    %v613 = vpack.c.bf16 %v577, %v576
    %v614 = vpack.c.bf16 %v579, %v578
    %v615 = vpack.c.bf16 %v581, %v580
    %v618 = vunpack.c.l.b16 %v582
    %v619 = vunpack.c.h.b16 %v582
    %v620 = vunpack.c.l.b16 %v583
    %v621 = vunpack.c.h.b16 %v583
    %v622 = vpack.c.b16 %v618, %v618
    %v623 = vpack.c.b16 %v619, %v619
    %v624 = vpack.c.b16 %v620, %v620
    %v625 = vpack.c.b16 %v621, %v621
    %630 = vmatpush.bf16.msra.mxu0 %v591
    %631 = vmatpush.bf16.msra.mxu0 %v590
    %632 = vmatpush.bf16.msra.mxu0 %v589
    %633 = vmatpush.bf16.msra.mxu0 %v588
    %634 = vmatpush.bf16.msra.mxu0 %v587
    %635 = vmatpush.bf16.msra.mxu0 %v586
    %636 = vmatpush.bf16.msra.mxu0 %v585
    %637 = vmatpush.bf16.msra.mxu0 %v584
    %638 = vmatmul.bf16.gmra.mxu0 %v622
    %v639 = vpop.f32.mrf.mxu0
    %v640 = vadd.f32 0.0, %v639
    %v641 = vpop.f32.mrf.mxu0
    %642 = vdwg.mxu0
    %643 = vmatpush.bf16.msra.mxu0 %v599
    %644 = vmatpush.bf16.msra.mxu0 %v598
    %645 = vmatpush.bf16.msra.mxu0 %v597
    %646 = vmatpush.bf16.msra.mxu0 %v596
    %647 = vmatpush.bf16.msra.mxu0 %v595
    %648 = vmatpush.bf16.msra.mxu0 %v594
    %649 = vmatpush.bf16.msra.mxu0 %v593
    %650 = vmatpush.bf16.msra.mxu0 %v592
    %651 = vmatmul.bf16.gmra.mxu0 %v623
    %v652 = vpop.f32.mrf.mxu0
    %v653 = vadd.f32 %v640, %v652
    %v654 = vpop.f32.mrf.mxu0
    %655 = vdwg.mxu0
    %656 = vmatpush.bf16.msra.mxu0 %v607
    %657 = vmatpush.bf16.msra.mxu0 %v606
    %658 = vmatpush.bf16.msra.mxu0 %v605
    %659 = vmatpush.bf16.msra.mxu0 %v604
    %660 = vmatpush.bf16.msra.mxu0 %v603
    %661 = vmatpush.bf16.msra.mxu0 %v602
    %662 = vmatpush.bf16.msra.mxu0 %v601
    %663 = vmatpush.bf16.msra.mxu0 %v600
    %664 = vmatmul.bf16.gmra.mxu0 %v624
    %v665 = vpop.f32.mrf.mxu0
    %v666 = vadd.f32 %v653, %v665
    %v667 = vpop.f32.mrf.mxu0
    %668 = vdwg.mxu0
    %669 = vmatpush.bf16.msra.mxu0 %v615
    %670 = vmatpush.bf16.msra.mxu0 %v614
    %671 = vmatpush.bf16.msra.mxu0 %v613
    %672 = vmatpush.bf16.msra.mxu0 %v612
    %673 = vmatpush.bf16.msra.mxu0 %v611
    %674 = vmatpush.bf16.msra.mxu0 %v610
    %675 = vmatpush.bf16.msra.mxu0 %v609
    %676 = vmatpush.bf16.msra.mxu0 %v608
    %677 = vmatmul.bf16.gmra.mxu0 %v625
    %v678 = vpop.f32.mrf.mxu0
    %v679 = vadd.f32 %v666, %v678
    %v680 = vpop.f32.mrf.mxu0
    %681 = vdwg.mxu0
    %v682 = vpack.c.bf16 %v679, %v679
    %v683 = vld [vmem:[#allocation5] sm:$0xff]
    %v684 = vld [vmem:[#allocation5 + $0x8] sm:$0xff]
    %v685 = vld [vmem:[#allocation5 + $0x10] sm:$0xff]
    %v686 = vld [vmem:[#allocation5 + $0x18] sm:$0xff]
    %v687 = vld [vmem:[#allocation5 + $0x20] sm:$0xff]
    %v688 = vld [vmem:[#allocation5 + $0x28] sm:$0xff]
    %v689 = vld [vmem:[#allocation5 + $0x30] sm:$0xff]
    %v690 = vld [vmem:[#allocation5 + $0x38] sm:$0xff]
    %v691 = vld [vmem:[%s5] sm:$0xf]
    %v693 = vperm.slane %v691, 0
    %v694 = vperm.slane %v691, 1
    %v695 = vperm.slane %v691, 2
    %v696 = vperm.slane %v691, 3
    %v709 = vunpack.c.l.b16 %v683
    %v710 = vunpack.c.h.b16 %v683
    %v711 = vunpack.c.l.b16 %v684
    %v712 = vunpack.c.h.b16 %v684
    %v713 = vunpack.c.l.b16 %v685
    %v714 = vunpack.c.h.b16 %v685
    %v715 = vunpack.c.l.b16 %v686
    %v716 = vunpack.c.h.b16 %v686
    %v717 = vunpack.c.l.b16 %v687
    %v718 = vunpack.c.h.b16 %v687
    %v719 = vunpack.c.l.b16 %v688
    %v720 = vunpack.c.h.b16 %v688
    %v721 = vunpack.c.l.b16 %v689
    %v722 = vunpack.c.h.b16 %v689
    %v723 = vunpack.c.l.b16 %v690
    %v724 = vunpack.c.h.b16 %v690
    %v725 = vpack.c.b16 %v713, %v709
    %v726 = vpack.c.b16 %v714, %v710
    %v727 = vpack.c.b16 %v715, %v711
    %v728 = vpack.c.b16 %v716, %v712
    %v729 = vpack.c.b16 %v721, %v717
    %v730 = vpack.c.b16 %v722, %v718
    %v731 = vpack.c.b16 %v723, %v719
    %v732 = vpack.c.b16 %v724, %v720
    %vm741 = vcmask 261120
    %v743 = vsel %vm741, %v682, 0
    %745 = vmatpush.bf16.msra.mxu0 0
    %746 = vmatpush.bf16.msra.mxu0 0
    %747 = vmatpush.bf16.msra.mxu0 0
    %748 = vmatpush.bf16.msra.mxu0 0
    %749 = vmatpush.bf16.msra.mxu0 0
    %750 = vmatpush.bf16.msra.mxu0 0
    %751 = vmatpush.bf16.msra.mxu0 %v729
    %752 = vmatpush.bf16.msra.mxu0 %v725
    %753 = vmatmul.bf16.gmra.mxu0 %v743
    %v754 = vpop.f32.mrf.mxu0
    %v755 = vadd.f32 %v693, %v754
    %v756 = vpop.f32.mrf.mxu0
    %757 = vdwg.mxu0
    %758 = vmatpush.bf16.msra.mxu0 0
    %759 = vmatpush.bf16.msra.mxu0 0
    %760 = vmatpush.bf16.msra.mxu0 0
    %761 = vmatpush.bf16.msra.mxu0 0
    %762 = vmatpush.bf16.msra.mxu0 0
    %763 = vmatpush.bf16.msra.mxu0 0
    %764 = vmatpush.bf16.msra.mxu0 %v730
    %765 = vmatpush.bf16.msra.mxu0 %v726
    %766 = vmatmul.bf16.gmra.mxu0 %v743
    %v767 = vpop.f32.mrf.mxu0
    %v768 = vadd.f32 %v694, %v767
    %v769 = vpop.f32.mrf.mxu0
    %770 = vdwg.mxu0
    %771 = vmatpush.bf16.msra.mxu0 0
    %772 = vmatpush.bf16.msra.mxu0 0
    %773 = vmatpush.bf16.msra.mxu0 0
    %774 = vmatpush.bf16.msra.mxu0 0
    %775 = vmatpush.bf16.msra.mxu0 0
    %776 = vmatpush.bf16.msra.mxu0 0
    %777 = vmatpush.bf16.msra.mxu0 %v731
    %778 = vmatpush.bf16.msra.mxu0 %v727
    %779 = vmatmul.bf16.gmra.mxu0 %v743
    %v780 = vpop.f32.mrf.mxu0
    %v781 = vadd.f32 %v695, %v780
    %v782 = vpop.f32.mrf.mxu0
    %783 = vdwg.mxu0
    %784 = vmatpush.bf16.msra.mxu0 0
    %785 = vmatpush.bf16.msra.mxu0 0
    %786 = vmatpush.bf16.msra.mxu0 0
    %787 = vmatpush.bf16.msra.mxu0 0
    %788 = vmatpush.bf16.msra.mxu0 0
    %789 = vmatpush.bf16.msra.mxu0 0
    %790 = vmatpush.bf16.msra.mxu0 %v732
    %791 = vmatpush.bf16.msra.mxu0 %v728
    %792 = vmatmul.bf16.gmra.mxu0 %v743
    %v793 = vpop.f32.mrf.mxu0
    %v794 = vadd.f32 %v696, %v793
    %v795 = vpop.f32.mrf.mxu0
    %796 = vdwg.mxu0
    %v797 = vmax.f32 %v755, 0.0
    %v798 = vmax.f32 %v768, 0.0
    %v799 = vmax.f32 %v781, 0.0
    %v800 = vmax.f32 %v794, 0.0
    %v801 = vpack.c.bf16 %v797, %v797
    %v802 = vpack.c.bf16 %v798, %v798
    %v803 = vpack.c.bf16 %v799, %v799
    %v804 = vpack.c.bf16 %v800, %v800
    %v805 = vld [vmem:[%s6] sm:$0xff]
    %v806 = vld [vmem:[%s6 + $0x8] sm:$0xff]
    %v807 = vld [vmem:[%s6 + $0x10] sm:$0xff]
    %v808 = vld [vmem:[%s6 + $0x18] sm:$0xff]
    %v809 = vld [vmem:[%s6 + $0x20] sm:$0xff]
    %v810 = vld [vmem:[%s6 + $0x28] sm:$0xff]
    %v811 = vld [vmem:[%s6 + $0x30] sm:$0xff]
    %v812 = vld [vmem:[%s6 + $0x38] sm:$0xff]
    %v813 = vld [vmem:[%s6 + $0x40] sm:$0xff]
    %v814 = vld [vmem:[%s6 + $0x48] sm:$0xff]
    %v815 = vld [vmem:[%s6 + $0x50] sm:$0xff]
    %v816 = vld [vmem:[%s6 + $0x58] sm:$0xff]
    %v817 = vld [vmem:[%s6 + $0x60] sm:$0xff]
    %v818 = vld [vmem:[%s6 + $0x68] sm:$0xff]
    %v819 = vld [vmem:[%s6 + $0x70] sm:$0xff]
    %v820 = vld [vmem:[%s6 + $0x78] sm:$0xff]
    %v821 = vld [vmem:[%s6 + $0x80] sm:$0xff]
    %v822 = vld [vmem:[%s6 + $0x88] sm:$0xff]
    %v823 = vld [vmem:[%s6 + $0x90] sm:$0xff]
    %v824 = vld [vmem:[%s6 + $0x98] sm:$0xff]
    %v825 = vld [vmem:[%s6 + $0xa0] sm:$0xff]
    %v826 = vld [vmem:[%s6 + $0xa8] sm:$0xff]
    %v827 = vld [vmem:[%s6 + $0xb0] sm:$0xff]
    %v828 = vld [vmem:[%s6 + $0xb8] sm:$0xff]
    %v829 = vld [vmem:[%s6 + $0xc0] sm:$0xff]
    %v830 = vld [vmem:[%s6 + $0xc8] sm:$0xff]
    %v831 = vld [vmem:[%s6 + $0xd0] sm:$0xff]
    %v832 = vld [vmem:[%s6 + $0xd8] sm:$0xff]
    %v833 = vld [vmem:[%s6 + $0xe0] sm:$0xff]
    %v834 = vld [vmem:[%s6 + $0xe8] sm:$0xff]
    %v835 = vld [vmem:[%s6 + $0xf0] sm:$0xff]
    %v836 = vld [vmem:[%s6 + $0xf8] sm:$0xff]
    %v837 = vld [vmem:[%s6 + $0x100] sm:$0xff]
    %v838 = vld [vmem:[%s6 + $0x108] sm:$0xff]
    %v839 = vld [vmem:[%s6 + $0x110] sm:$0xff]
    %v840 = vld [vmem:[%s6 + $0x118] sm:$0xff]
    %v841 = vld [vmem:[%s6 + $0x120] sm:$0xff]
    %v842 = vld [vmem:[%s6 + $0x128] sm:$0xff]
    %v843 = vld [vmem:[%s6 + $0x130] sm:$0xff]
    %v844 = vld [vmem:[%s6 + $0x138] sm:$0xff]
    %v845 = vld [vmem:[%s6 + $0x140] sm:$0xff]
    %v846 = vld [vmem:[%s6 + $0x148] sm:$0xff]
    %v847 = vld [vmem:[%s6 + $0x150] sm:$0xff]
    %v848 = vld [vmem:[%s6 + $0x158] sm:$0xff]
    %v849 = vld [vmem:[%s6 + $0x160] sm:$0xff]
    %v850 = vld [vmem:[%s6 + $0x168] sm:$0xff]
    %v851 = vld [vmem:[%s6 + $0x170] sm:$0xff]
    %v852 = vld [vmem:[%s6 + $0x178] sm:$0xff]
    %v853 = vld [vmem:[%s6 + $0x180] sm:$0xff]
    %v854 = vld [vmem:[%s6 + $0x188] sm:$0xff]
    %v855 = vld [vmem:[%s6 + $0x190] sm:$0xff]
    %v856 = vld [vmem:[%s6 + $0x198] sm:$0xff]
    %v857 = vld [vmem:[%s6 + $0x1a0] sm:$0xff]
    %v858 = vld [vmem:[%s6 + $0x1a8] sm:$0xff]
    %v859 = vld [vmem:[%s6 + $0x1b0] sm:$0xff]
    %v860 = vld [vmem:[%s6 + $0x1b8] sm:$0xff]
    %v861 = vld [vmem:[%s6 + $0x1c0] sm:$0xff]
    %v862 = vld [vmem:[%s6 + $0x1c8] sm:$0xff]
    %v863 = vld [vmem:[%s6 + $0x1d0] sm:$0xff]
    %v864 = vld [vmem:[%s6 + $0x1d8] sm:$0xff]
    %v865 = vld [vmem:[%s6 + $0x1e0] sm:$0xff]
    %v866 = vld [vmem:[%s6 + $0x1e8] sm:$0xff]
    %v867 = vld [vmem:[%s6 + $0x1f0] sm:$0xff]
    %v868 = vld [vmem:[%s6 + $0x1f8] sm:$0xff]
    %v869 = vld [vmem:[#allocation7] sm:$0x3]
    %v871 = vperm.slane %v869, 0
    %v872 = vperm.slane %v869, 1
    %v939 = vunpack.c.l.b16 %v805
    %v940 = vunpack.c.h.b16 %v805
    %v941 = vunpack.c.l.b16 %v806
    %v942 = vunpack.c.h.b16 %v806
    %v943 = vunpack.c.l.b16 %v807
    %v944 = vunpack.c.h.b16 %v807
    %v945 = vunpack.c.l.b16 %v808
    %v946 = vunpack.c.h.b16 %v808
    %v947 = vunpack.c.l.b16 %v809
    %v948 = vunpack.c.h.b16 %v809
    %v949 = vunpack.c.l.b16 %v810
    %v950 = vunpack.c.h.b16 %v810
    %v951 = vunpack.c.l.b16 %v811
    %v952 = vunpack.c.h.b16 %v811
    %v953 = vunpack.c.l.b16 %v812
    %v954 = vunpack.c.h.b16 %v812
    %v955 = vunpack.c.l.b16 %v813
    %v956 = vunpack.c.h.b16 %v813
    %v957 = vunpack.c.l.b16 %v814
    %v958 = vunpack.c.h.b16 %v814
    %v959 = vunpack.c.l.b16 %v815
    %v960 = vunpack.c.h.b16 %v815
    %v961 = vunpack.c.l.b16 %v816
    %v962 = vunpack.c.h.b16 %v816
    %v963 = vunpack.c.l.b16 %v817
    %v964 = vunpack.c.h.b16 %v817
    %v965 = vunpack.c.l.b16 %v818
    %v966 = vunpack.c.h.b16 %v818
    %v967 = vunpack.c.l.b16 %v819
    %v968 = vunpack.c.h.b16 %v819
    %v969 = vunpack.c.l.b16 %v820
    %v970 = vunpack.c.h.b16 %v820
    %v971 = vunpack.c.l.b16 %v821
    %v972 = vunpack.c.h.b16 %v821
    %v973 = vunpack.c.l.b16 %v822
    %v974 = vunpack.c.h.b16 %v822
    %v975 = vunpack.c.l.b16 %v823
    %v976 = vunpack.c.h.b16 %v823
    %v977 = vunpack.c.l.b16 %v824
    %v978 = vunpack.c.h.b16 %v824
    %v979 = vunpack.c.l.b16 %v825
    %v980 = vunpack.c.h.b16 %v825
    %v981 = vunpack.c.l.b16 %v826
    %v982 = vunpack.c.h.b16 %v826
    %v983 = vunpack.c.l.b16 %v827
    %v984 = vunpack.c.h.b16 %v827
    %v985 = vunpack.c.l.b16 %v828
    %v986 = vunpack.c.h.b16 %v828
    %v987 = vunpack.c.l.b16 %v829
    %v988 = vunpack.c.h.b16 %v829
    %v989 = vunpack.c.l.b16 %v830
    %v990 = vunpack.c.h.b16 %v830
    %v991 = vunpack.c.l.b16 %v831
    %v992 = vunpack.c.h.b16 %v831
    %v993 = vunpack.c.l.b16 %v832
    %v994 = vunpack.c.h.b16 %v832
    %v995 = vunpack.c.l.b16 %v833
    %v996 = vunpack.c.h.b16 %v833
    %v997 = vunpack.c.l.b16 %v834
    %v998 = vunpack.c.h.b16 %v834
    %v999 = vunpack.c.l.b16 %v835
    %v1000 = vunpack.c.h.b16 %v835
    %v1001 = vunpack.c.l.b16 %v836
    %v1002 = vunpack.c.h.b16 %v836
    %v1003 = vunpack.c.l.b16 %v837
    %v1004 = vunpack.c.h.b16 %v837
    %v1005 = vunpack.c.l.b16 %v838
    %v1006 = vunpack.c.h.b16 %v838
    %v1007 = vunpack.c.l.b16 %v839
    %v1008 = vunpack.c.h.b16 %v839
    %v1009 = vunpack.c.l.b16 %v840
    %v1010 = vunpack.c.h.b16 %v840
    %v1011 = vunpack.c.l.b16 %v841
    %v1012 = vunpack.c.h.b16 %v841
    %v1013 = vunpack.c.l.b16 %v842
    %v1014 = vunpack.c.h.b16 %v842
    %v1015 = vunpack.c.l.b16 %v843
    %v1016 = vunpack.c.h.b16 %v843
    %v1017 = vunpack.c.l.b16 %v844
    %v1018 = vunpack.c.h.b16 %v844
    %v1019 = vunpack.c.l.b16 %v845
    %v1020 = vunpack.c.h.b16 %v845
    %v1021 = vunpack.c.l.b16 %v846
    %v1022 = vunpack.c.h.b16 %v846
    %v1023 = vunpack.c.l.b16 %v847
    %v1024 = vunpack.c.h.b16 %v847
    %v1025 = vunpack.c.l.b16 %v848
    %v1026 = vunpack.c.h.b16 %v848
    %v1027 = vunpack.c.l.b16 %v849
    %v1028 = vunpack.c.h.b16 %v849
    %v1029 = vunpack.c.l.b16 %v850
    %v1030 = vunpack.c.h.b16 %v850
    %v1031 = vunpack.c.l.b16 %v851
    %v1032 = vunpack.c.h.b16 %v851
    %v1033 = vunpack.c.l.b16 %v852
    %v1034 = vunpack.c.h.b16 %v852
    %v1035 = vunpack.c.l.b16 %v853
    %v1036 = vunpack.c.h.b16 %v853
    %v1037 = vunpack.c.l.b16 %v854
    %v1038 = vunpack.c.h.b16 %v854
    %v1039 = vunpack.c.l.b16 %v855
    %v1040 = vunpack.c.h.b16 %v855
    %v1041 = vunpack.c.l.b16 %v856
    %v1042 = vunpack.c.h.b16 %v856
    %v1043 = vunpack.c.l.b16 %v857
    %v1044 = vunpack.c.h.b16 %v857
    %v1045 = vunpack.c.l.b16 %v858
    %v1046 = vunpack.c.h.b16 %v858
    %v1047 = vunpack.c.l.b16 %v859
    %v1048 = vunpack.c.h.b16 %v859
    %v1049 = vunpack.c.l.b16 %v860
    %v1050 = vunpack.c.h.b16 %v860
    %v1051 = vunpack.c.l.b16 %v861
    %v1052 = vunpack.c.h.b16 %v861
    %v1053 = vunpack.c.l.b16 %v862
    %v1054 = vunpack.c.h.b16 %v862
    %v1055 = vunpack.c.l.b16 %v863
    %v1056 = vunpack.c.h.b16 %v863
    %v1057 = vunpack.c.l.b16 %v864
    %v1058 = vunpack.c.h.b16 %v864
    %v1059 = vunpack.c.l.b16 %v865
    %v1060 = vunpack.c.h.b16 %v865
    %v1061 = vunpack.c.l.b16 %v866
    %v1062 = vunpack.c.h.b16 %v866
    %v1063 = vunpack.c.l.b16 %v867
    %v1064 = vunpack.c.h.b16 %v867
    %v1065 = vunpack.c.l.b16 %v868
    %v1066 = vunpack.c.h.b16 %v868
    %v1067 = vpack.c.b16 %v941, %v939
    %v1068 = vpack.c.b16 %v942, %v940
    %v1069 = vpack.c.b16 %v945, %v943
    %v1070 = vpack.c.b16 %v946, %v944
    %v1071 = vpack.c.b16 %v949, %v947
    %v1072 = vpack.c.b16 %v950, %v948
    %v1073 = vpack.c.b16 %v953, %v951
    %v1074 = vpack.c.b16 %v954, %v952
    %v1075 = vpack.c.b16 %v957, %v955
    %v1076 = vpack.c.b16 %v958, %v956
    %v1077 = vpack.c.b16 %v961, %v959
    %v1078 = vpack.c.b16 %v962, %v960
    %v1079 = vpack.c.b16 %v965, %v963
    %v1080 = vpack.c.b16 %v966, %v964
    %v1081 = vpack.c.b16 %v969, %v967
    %v1082 = vpack.c.b16 %v970, %v968
    %v1083 = vpack.c.b16 %v973, %v971
    %v1084 = vpack.c.b16 %v974, %v972
    %v1085 = vpack.c.b16 %v977, %v975
    %v1086 = vpack.c.b16 %v978, %v976
    %v1087 = vpack.c.b16 %v981, %v979
    %v1088 = vpack.c.b16 %v982, %v980
    %v1089 = vpack.c.b16 %v985, %v983
    %v1090 = vpack.c.b16 %v986, %v984
    %v1091 = vpack.c.b16 %v989, %v987
    %v1092 = vpack.c.b16 %v990, %v988
    %v1093 = vpack.c.b16 %v993, %v991
    %v1094 = vpack.c.b16 %v994, %v992
    %v1095 = vpack.c.b16 %v997, %v995
    %v1096 = vpack.c.b16 %v998, %v996
    %v1097 = vpack.c.b16 %v1001, %v999
    %v1098 = vpack.c.b16 %v1002, %v1000
    %v1099 = vpack.c.b16 %v1005, %v1003
    %v1100 = vpack.c.b16 %v1006, %v1004
    %v1101 = vpack.c.b16 %v1009, %v1007
    %v1102 = vpack.c.b16 %v1010, %v1008
    %v1103 = vpack.c.b16 %v1013, %v1011
    %v1104 = vpack.c.b16 %v1014, %v1012
    %v1105 = vpack.c.b16 %v1017, %v1015
    %v1106 = vpack.c.b16 %v1018, %v1016
    %v1107 = vpack.c.b16 %v1021, %v1019
    %v1108 = vpack.c.b16 %v1022, %v1020
    %v1109 = vpack.c.b16 %v1025, %v1023
    %v1110 = vpack.c.b16 %v1026, %v1024
    %v1111 = vpack.c.b16 %v1029, %v1027
    %v1112 = vpack.c.b16 %v1030, %v1028
    %v1113 = vpack.c.b16 %v1033, %v1031
    %v1114 = vpack.c.b16 %v1034, %v1032
    %v1115 = vpack.c.b16 %v1037, %v1035
    %v1116 = vpack.c.b16 %v1038, %v1036
    %v1117 = vpack.c.b16 %v1041, %v1039
    %v1118 = vpack.c.b16 %v1042, %v1040
    %v1119 = vpack.c.b16 %v1045, %v1043
    %v1120 = vpack.c.b16 %v1046, %v1044
    %v1121 = vpack.c.b16 %v1049, %v1047
    %v1122 = vpack.c.b16 %v1050, %v1048
    %v1123 = vpack.c.b16 %v1053, %v1051
    %v1124 = vpack.c.b16 %v1054, %v1052
    %v1125 = vpack.c.b16 %v1057, %v1055
    %v1126 = vpack.c.b16 %v1058, %v1056
    %v1127 = vpack.c.b16 %v1061, %v1059
    %v1128 = vpack.c.b16 %v1062, %v1060
    %v1129 = vpack.c.b16 %v1065, %v1063
    %v1130 = vpack.c.b16 %v1066, %v1064
    %1195 = vmatpush.bf16.msra.mxu0 %v1081
    %1196 = vmatpush.bf16.msra.mxu0 %v1079
    %1197 = vmatpush.bf16.msra.mxu0 %v1077
    %1198 = vmatpush.bf16.msra.mxu0 %v1075
    %1199 = vmatpush.bf16.msra.mxu0 %v1073
    %1200 = vmatpush.bf16.msra.mxu0 %v1071
    %1201 = vmatpush.bf16.msra.mxu0 %v1069
    %1202 = vmatpush.bf16.msra.mxu0 %v1067
    %1203 = vmatmul.bf16.gmra.mxu0 %v801
    %v1204 = vpop.f32.mrf.mxu0
    %v1205 = vadd.f32 %v871, %v1204
    %v1206 = vpop.f32.mrf.mxu0
    %1207 = vdwg.mxu0
    %1208 = vmatpush.bf16.msra.mxu0 %v1097
    %1209 = vmatpush.bf16.msra.mxu0 %v1095
    %1210 = vmatpush.bf16.msra.mxu0 %v1093
    %1211 = vmatpush.bf16.msra.mxu0 %v1091
    %1212 = vmatpush.bf16.msra.mxu0 %v1089
    %1213 = vmatpush.bf16.msra.mxu0 %v1087
    %1214 = vmatpush.bf16.msra.mxu0 %v1085
    %1215 = vmatpush.bf16.msra.mxu0 %v1083
    %1216 = vmatmul.bf16.gmra.mxu0 %v802
    %v1217 = vpop.f32.mrf.mxu0
    %v1218 = vadd.f32 %v1205, %v1217
    %v1219 = vpop.f32.mrf.mxu0
    %1220 = vdwg.mxu0
    %1221 = vmatpush.bf16.msra.mxu0 %v1113
    %1222 = vmatpush.bf16.msra.mxu0 %v1111
    %1223 = vmatpush.bf16.msra.mxu0 %v1109
    %1224 = vmatpush.bf16.msra.mxu0 %v1107
    %1225 = vmatpush.bf16.msra.mxu0 %v1105
    %1226 = vmatpush.bf16.msra.mxu0 %v1103
    %1227 = vmatpush.bf16.msra.mxu0 %v1101
    %1228 = vmatpush.bf16.msra.mxu0 %v1099
    %1229 = vmatmul.bf16.gmra.mxu0 %v803
    %v1230 = vpop.f32.mrf.mxu0
    %v1231 = vadd.f32 %v1218, %v1230
    %v1232 = vpop.f32.mrf.mxu0
    %1233 = vdwg.mxu0
    %1234 = vmatpush.bf16.msra.mxu0 %v1129
    %1235 = vmatpush.bf16.msra.mxu0 %v1127
    %1236 = vmatpush.bf16.msra.mxu0 %v1125
    %1237 = vmatpush.bf16.msra.mxu0 %v1123
    %1238 = vmatpush.bf16.msra.mxu0 %v1121
    %1239 = vmatpush.bf16.msra.mxu0 %v1119
    %1240 = vmatpush.bf16.msra.mxu0 %v1117
    %1241 = vmatpush.bf16.msra.mxu0 %v1115
    %1242 = vmatmul.bf16.gmra.mxu0 %v804
    %v1243 = vpop.f32.mrf.mxu0
    %v1244 = vadd.f32 %v1231, %v1243
    %v1245 = vpop.f32.mrf.mxu0
    %1246 = vdwg.mxu0
    %1247 = vmatpush.bf16.msra.mxu0 %v1082
    %1248 = vmatpush.bf16.msra.mxu0 %v1080
    %1249 = vmatpush.bf16.msra.mxu0 %v1078
    %1250 = vmatpush.bf16.msra.mxu0 %v1076
    %1251 = vmatpush.bf16.msra.mxu0 %v1074
    %1252 = vmatpush.bf16.msra.mxu0 %v1072
    %1253 = vmatpush.bf16.msra.mxu0 %v1070
    %1254 = vmatpush.bf16.msra.mxu0 %v1068
    %1255 = vmatmul.bf16.gmra.mxu0 %v801
    %v1256 = vpop.f32.mrf.mxu0
    %v1257 = vadd.f32 %v872, %v1256
    %v1258 = vpop.f32.mrf.mxu0
    %1259 = vdwg.mxu0
    %1260 = vmatpush.bf16.msra.mxu0 %v1098
    %1261 = vmatpush.bf16.msra.mxu0 %v1096
    %1262 = vmatpush.bf16.msra.mxu0 %v1094
    %1263 = vmatpush.bf16.msra.mxu0 %v1092
    %1264 = vmatpush.bf16.msra.mxu0 %v1090
    %1265 = vmatpush.bf16.msra.mxu0 %v1088
    %1266 = vmatpush.bf16.msra.mxu0 %v1086
    %1267 = vmatpush.bf16.msra.mxu0 %v1084
    %1268 = vmatmul.bf16.gmra.mxu0 %v802
    %v1269 = vpop.f32.mrf.mxu0
    %v1270 = vadd.f32 %v1257, %v1269
    %v1271 = vpop.f32.mrf.mxu0
    %1272 = vdwg.mxu0
    %1273 = vmatpush.bf16.msra.mxu0 %v1114
    %1274 = vmatpush.bf16.msra.mxu0 %v1112
    %1275 = vmatpush.bf16.msra.mxu0 %v1110
    %1276 = vmatpush.bf16.msra.mxu0 %v1108
    %1277 = vmatpush.bf16.msra.mxu0 %v1106
    %1278 = vmatpush.bf16.msra.mxu0 %v1104
    %1279 = vmatpush.bf16.msra.mxu0 %v1102
    %1280 = vmatpush.bf16.msra.mxu0 %v1100
    %1281 = vmatmul.bf16.gmra.mxu0 %v803
    %v1282 = vpop.f32.mrf.mxu0
    %v1283 = vadd.f32 %v1270, %v1282
    %v1284 = vpop.f32.mrf.mxu0
    %1285 = vdwg.mxu0
    %1286 = vmatpush.bf16.msra.mxu0 %v1130
    %1287 = vmatpush.bf16.msra.mxu0 %v1128
    %1288 = vmatpush.bf16.msra.mxu0 %v1126
    %1289 = vmatpush.bf16.msra.mxu0 %v1124
    %1290 = vmatpush.bf16.msra.mxu0 %v1122
    %1291 = vmatpush.bf16.msra.mxu0 %v1120
    %1292 = vmatpush.bf16.msra.mxu0 %v1118
    %1293 = vmatpush.bf16.msra.mxu0 %v1116
    %1294 = vmatmul.bf16.gmra.mxu0 %v804
    %v1295 = vpop.f32.mrf.mxu0
    %v1296 = vadd.f32 %v1283, %v1295
    %v1297 = vpop.f32.mrf.mxu0
    %1298 = vdwg.mxu0
    %v1299 = vmax.f32 %v1244, 0.0
    %v1300 = vmax.f32 %v1296, 0.0
    %v1301 = vpack.c.bf16 %v1299, %v1299
    %v1302 = vpack.c.bf16 %v1300, %v1300
    %v1303 = vld [vmem:[#allocation8] sm:$0xf]
    %v1304 = vld [vmem:[#allocation8 + $0x4] sm:$0xf]
    %v1305 = vld [vmem:[#allocation8 + $0x8] sm:$0xf]
    %v1306 = vld [vmem:[#allocation8 + $0xc] sm:$0xf]
    %v1307 = vld [vmem:[#allocation8 + $0x10] sm:$0xf]
    %v1308 = vld [vmem:[#allocation8 + $0x14] sm:$0xf]
    %v1309 = vld [vmem:[#allocation8 + $0x18] sm:$0xf]
    %v1310 = vld [vmem:[#allocation8 + $0x1c] sm:$0xf]
    %v1311 = vld [vmem:[#allocation8 + $0x20] sm:$0xf]
    %v1312 = vld [vmem:[#allocation8 + $0x24] sm:$0xf]
    %v1313 = vld [vmem:[#allocation8 + $0x28] sm:$0xf]
    %v1314 = vld [vmem:[#allocation8 + $0x2c] sm:$0xf]
    %v1315 = vld [vmem:[#allocation8 + $0x30] sm:$0xf]
    %v1316 = vld [vmem:[#allocation8 + $0x34] sm:$0xf]
    %v1317 = vld [vmem:[#allocation8 + $0x38] sm:$0xf]
    %v1318 = vld [vmem:[#allocation8 + $0x3c] sm:$0xf]
    %v1319 = vld [vmem:[#allocation8 + $0x40] sm:$0xf]
    %v1320 = vld [vmem:[#allocation8 + $0x44] sm:$0xf]
    %v1321 = vld [vmem:[#allocation8 + $0x48] sm:$0xf]
    %v1322 = vld [vmem:[#allocation8 + $0x4c] sm:$0xf]
    %v1323 = vld [vmem:[#allocation8 + $0x50] sm:$0xf]
    %v1324 = vld [vmem:[#allocation8 + $0x54] sm:$0xf]
    %v1325 = vld [vmem:[#allocation8 + $0x58] sm:$0xf]
    %v1326 = vld [vmem:[#allocation8 + $0x5c] sm:$0xf]
    %v1327 = vld [vmem:[#allocation8 + $0x60] sm:$0xf]
    %v1328 = vld [vmem:[#allocation8 + $0x64] sm:$0xf]
    %v1329 = vld [vmem:[#allocation8 + $0x68] sm:$0xf]
    %v1330 = vld [vmem:[#allocation8 + $0x6c] sm:$0xf]
    %v1331 = vld [vmem:[#allocation8 + $0x70] sm:$0xf]
    %v1332 = vld [vmem:[#allocation8 + $0x74] sm:$0xf]
    %v1333 = vld [vmem:[#allocation8 + $0x78] sm:$0xf]
    %v1334 = vld [vmem:[#allocation8 + $0x7c] sm:$0xf]
    %v1335 = vld [vmem:[#allocation10] sm:$0x1]
    %v1337 = vperm.slane %v1335, 0
    %v1371 = vunpack.c.l.b16 %v1303
    %v1372 = vunpack.c.l.b16 %v1304
    %v1373 = vunpack.c.l.b16 %v1305
    %v1374 = vunpack.c.l.b16 %v1306
    %v1375 = vunpack.c.l.b16 %v1307
    %v1376 = vunpack.c.l.b16 %v1308
    %v1377 = vunpack.c.l.b16 %v1309
    %v1378 = vunpack.c.l.b16 %v1310
    %v1379 = vunpack.c.l.b16 %v1311
    %v1380 = vunpack.c.l.b16 %v1312
    %v1381 = vunpack.c.l.b16 %v1313
    %v1382 = vunpack.c.l.b16 %v1314
    %v1383 = vunpack.c.l.b16 %v1315
    %v1384 = vunpack.c.l.b16 %v1316
    %v1385 = vunpack.c.l.b16 %v1317
    %v1386 = vunpack.c.l.b16 %v1318
    %v1387 = vunpack.c.l.b16 %v1319
    %v1388 = vunpack.c.l.b16 %v1320
    %v1389 = vunpack.c.l.b16 %v1321
    %v1390 = vunpack.c.l.b16 %v1322
    %v1391 = vunpack.c.l.b16 %v1323
    %v1392 = vunpack.c.l.b16 %v1324
    %v1393 = vunpack.c.l.b16 %v1325
    %v1394 = vunpack.c.l.b16 %v1326
    %v1395 = vunpack.c.l.b16 %v1327
    %v1396 = vunpack.c.l.b16 %v1328
    %v1397 = vunpack.c.l.b16 %v1329
    %v1398 = vunpack.c.l.b16 %v1330
    %v1399 = vunpack.c.l.b16 %v1331
    %v1400 = vunpack.c.l.b16 %v1332
    %v1401 = vunpack.c.l.b16 %v1333
    %v1402 = vunpack.c.l.b16 %v1334
    %v1403 = vpack.c.b16 %v1372, %v1371
    %v1404 = vpack.c.b16 %v1374, %v1373
    %v1405 = vpack.c.b16 %v1376, %v1375
    %v1406 = vpack.c.b16 %v1378, %v1377
    %v1407 = vpack.c.b16 %v1380, %v1379
    %v1408 = vpack.c.b16 %v1382, %v1381
    %v1409 = vpack.c.b16 %v1384, %v1383
    %v1410 = vpack.c.b16 %v1386, %v1385
    %v1411 = vpack.c.b16 %v1388, %v1387
    %v1412 = vpack.c.b16 %v1390, %v1389
    %v1413 = vpack.c.b16 %v1392, %v1391
    %v1414 = vpack.c.b16 %v1394, %v1393
    %v1415 = vpack.c.b16 %v1396, %v1395
    %v1416 = vpack.c.b16 %v1398, %v1397
    %v1417 = vpack.c.b16 %v1400, %v1399
    %v1418 = vpack.c.b16 %v1402, %v1401
    %1435 = vmatpush.bf16.msra.mxu0 %v1410
    %1436 = vmatpush.bf16.msra.mxu0 %v1409
    %1437 = vmatpush.bf16.msra.mxu0 %v1408
    %1438 = vmatpush.bf16.msra.mxu0 %v1407
    %1439 = vmatpush.bf16.msra.mxu0 %v1406
    %1440 = vmatpush.bf16.msra.mxu0 %v1405
    %1441 = vmatpush.bf16.msra.mxu0 %v1404
    %1442 = vmatpush.bf16.msra.mxu0 %v1403
    %1443 = vmatmul.bf16.gmra.mxu0 %v1301
    %v1444 = vpop.f32.mrf.mxu0
    %v1445 = vadd.f32 %v1337, %v1444
    %v1446 = vpop.f32.mrf.mxu0
    %1447 = vdwg.mxu0
    %1448 = vmatpush.bf16.msra.mxu0 %v1418
    %1449 = vmatpush.bf16.msra.mxu0 %v1417
    %1450 = vmatpush.bf16.msra.mxu0 %v1416
    %1451 = vmatpush.bf16.msra.mxu0 %v1415
    %1452 = vmatpush.bf16.msra.mxu0 %v1414
    %1453 = vmatpush.bf16.msra.mxu0 %v1413
    %1454 = vmatpush.bf16.msra.mxu0 %v1412
    %1455 = vmatpush.bf16.msra.mxu0 %v1411
    %1456 = vmatmul.bf16.gmra.mxu0 %v1302
    %v1457 = vpop.f32.mrf.mxu0
    %v1458 = vadd.f32 %v1445, %v1457
    %v1459 = vpop.f32.mrf.mxu0
    %1460 = vdwg.mxu0
    %v1461 = vmax.f32 %v1458, 0.0
    %v1462 = vpack.c.bf16 %v1461, %v1461
    %v1463 = vld [vmem:[#allocation11] sm:$0xf]
    %v1464 = vld [vmem:[#allocation11 + $0x4] sm:$0xf]
    %v1465 = vld [vmem:[#allocation11 + $0x8] sm:$0xf]
    %v1466 = vld [vmem:[#allocation11 + $0xc] sm:$0xf]
    %v1467 = vld [vmem:[#allocation11 + $0x10] sm:$0xf]
    %v1468 = vld [vmem:[#allocation11 + $0x14] sm:$0xf]
    %v1469 = vld [vmem:[#allocation11 + $0x18] sm:$0xf]
    %v1470 = vld [vmem:[#allocation11 + $0x1c] sm:$0xf]
    %v1471 = vld [vmem:[#allocation11 + $0x20] sm:$0xf]
    %v1472 = vld [vmem:[#allocation11 + $0x24] sm:$0xf]
    %v1473 = vld [vmem:[#allocation11 + $0x28] sm:$0xf]
    %v1474 = vld [vmem:[#allocation11 + $0x2c] sm:$0xf]
    %v1475 = vld [vmem:[#allocation11 + $0x30] sm:$0xf]
    %v1476 = vld [vmem:[#allocation11 + $0x34] sm:$0xf]
    %v1477 = vld [vmem:[#allocation11 + $0x38] sm:$0xf]
    %v1478 = vld [vmem:[#allocation11 + $0x3c] sm:$0xf]
    %v1479 = vld [vmem:[#allocation13] sm:$0x1]
    %v1481 = vperm.slane %v1479, 0
    %v1499 = vunpack.c.l.b16 %v1463
    %v1500 = vunpack.c.l.b16 %v1464
    %v1501 = vunpack.c.l.b16 %v1465
    %v1502 = vunpack.c.l.b16 %v1466
    %v1503 = vunpack.c.l.b16 %v1467
    %v1504 = vunpack.c.l.b16 %v1468
    %v1505 = vunpack.c.l.b16 %v1469
    %v1506 = vunpack.c.l.b16 %v1470
    %v1507 = vunpack.c.l.b16 %v1471
    %v1508 = vunpack.c.l.b16 %v1472
    %v1509 = vunpack.c.l.b16 %v1473
    %v1510 = vunpack.c.l.b16 %v1474
    %v1511 = vunpack.c.l.b16 %v1475
    %v1512 = vunpack.c.l.b16 %v1476
    %v1513 = vunpack.c.l.b16 %v1477
    %v1514 = vunpack.c.l.b16 %v1478
    %v1515 = vpack.c.b16 %v1500, %v1499
    %v1516 = vpack.c.b16 %v1502, %v1501
    %v1517 = vpack.c.b16 %v1504, %v1503
    %v1518 = vpack.c.b16 %v1506, %v1505
    %v1519 = vpack.c.b16 %v1508, %v1507
    %v1520 = vpack.c.b16 %v1510, %v1509
    %v1521 = vpack.c.b16 %v1512, %v1511
    %v1522 = vpack.c.b16 %v1514, %v1513
    %1531 = vmatpush.bf16.msra.mxu0 %v1522
    %1532 = vmatpush.bf16.msra.mxu0 %v1521
    %1533 = vmatpush.bf16.msra.mxu0 %v1520
    %1534 = vmatpush.bf16.msra.mxu0 %v1519
    %1535 = vmatpush.bf16.msra.mxu0 %v1518
    %1536 = vmatpush.bf16.msra.mxu0 %v1517
    %1537 = vmatpush.bf16.msra.mxu0 %v1516
    %1538 = vmatpush.bf16.msra.mxu0 %v1515
    %1539 = vmatmul.bf16.gmra.mxu0 %v1462
    %v1540 = vpop.f32.mrf.mxu0
    %v1541 = vadd.f32 %v1481, %v1540
    %v1542 = vpop.f32.mrf.mxu0
    %1543 = vdwg.mxu0
    %1544 = vst [vmem:[#allocation14] sm:$0xff] %v1541
    %1545 = vmax.xlane.f32.xlu0 %v1541
    %v1546 = vpop.xlane.xlu0 %1545
    %v1547 = vsub.f32 %v1541, %v1546
    %v1548 = vmul.f32 %v1547, 1.442695
    %v1549 = vpow.pop %v1548
    %1550 = vadd.xlane.f32.xlu0 %v1549
    %v1551 = vpop.xlane.xlu0 %1550
    %v1552 = vrcp.pop %v1551
    %v1553 = vmul.f32 %v1549, %v1552
    %1554 = vst [vmem:[#allocation15] sm:$0xff] %v1553
    // Predicated region
    $region78: #{tpu_custom_call.1} parent=1 // pred_check
      _
    $region79: #{tpu_custom_call.1} parent=1 // pred_check_branch
      %1556 = sbr.rel (0) target = $region81
    $region80: #{tpu_custom_call.1} parent=1 // pred_region
      %1558 = vsyncadd [#allocation4], 0
      %s1560 = sshll.u32 [#allocation14], 4
      %s1561 = int_to_ptr.vmem [resolvable:$true] %s1560
      %s1562 = sshll.u32 %s12, 4
      %s1563 = int_to_ptr.hbm [resolvable:$true] %s1562
      %1565 = dma.vmem_to_hbm [thread:$0]  %s1561, 128, %s1563, [#allocation4]
    $region81: #{tpu_custom_call.1} parent=1 // pred_fallthru
      _
    // Predicated region
    $region82: #{tpu_custom_call.1} parent=1 // pred_check
      _
    $region83: #{tpu_custom_call.1} parent=1 // pred_check_branch
      %1567 = sbr.rel (0) target = $region85
    $region84: #{tpu_custom_call.1} parent=1 // pred_region
      %1569 = vsyncadd [#allocation16], 0
      %s1571 = sshll.u32 [#allocation15], 4
      %s1572 = int_to_ptr.vmem [resolvable:$true] %s1571
      %s1573 = sshll.u32 %s13, 4
      %s1574 = int_to_ptr.hbm [resolvable:$true] %s1573
      %1576 = dma.vmem_to_hbm [thread:$0]  %s1572, 128, %s1574, [#allocation16]
    $region85: #{tpu_custom_call.1} parent=1 // pred_fallthru
      _
    // Predicated region
    $region86: #{tpu_custom_call.1} parent=1 // pred_check
      _
    $region87: #{tpu_custom_call.1} parent=1 // pred_check_branch
      %1578 = sbr.rel (0) target = $region89
    $region88: #{tpu_custom_call.1} parent=1 // pred_region
      %1580 = dma.done [#allocation4], 128
    $region89: #{tpu_custom_call.1} parent=1 // pred_fallthru
      _
    // Predicated region
    $region90: #{tpu_custom_call.1} parent=1 // pred_check
      _
    $region91: #{tpu_custom_call.1} parent=1 // pred_check_branch
      %1582 = sbr.rel (0) target = $region93
    $region92: #{tpu_custom_call.1} parent=1 // pred_region
      %1584 = dma.done [#allocation16], 128
    $region93: #{tpu_custom_call.1} parent=1 // pred_fallthru
      _
    %1585 = vsyncpa [#allocation3], 1
    %1586 = vsyncpa [#allocation6], 1
    %1587 = vsyncpa [#allocation9], 1
    %1588 = vsyncpa [#allocation12], 1
    %1589 = vsyncpa [#allocation4], 1
    %1590 = vsyncpa [#allocation16], 1

</llo_original>
